<compile_context>
chip_gen: v6e
topology: v6e:2x2x1
jax: 0.10.0
libtpu: 0.0.40
codegen_flags: <defaults>
</compile_context>

<pallas_src>
import functools

import jax
import jax.numpy as jnp
from jax.experimental import pallas as pl
from jax.experimental.pallas import tpu as pltpu

IN_CHANNELS = 3
C1, C2, C3 = 64, 128, 512
L3_CHUNK = 128          # layer-3 output-channel chunk (4 chunks of 128)


def _embed_kernel(x_ref, w1_ref, b1_ref, w2_ref, b2_ref, w3_ref, b3_ref, o_ref):
    """One point tile: x (D, tn) f32 -> out (512, tn) written in row chunks.

    Weights are stored transposed (Cout, Cin); biases are (Cout, 1) columns.
    """
    x = x_ref[...]                        # (D, tn) f32
    w1 = w1_ref[...]                      # (C1, D) f32
    d, tn = x.shape

    # Layer 1 (3 -> 64) on the VPU as broadcast-FMAs: K=3 would use only 3
    # rows of the MXU contraction dim, and VALU slots have plenty of slack.
    h1 = jnp.broadcast_to(b1_ref[...], (C1, tn))
    for k in range(d):
        h1 = h1 + w1[:, k:k + 1] * x[k:k + 1, :]
    h1 = jnp.maximum(h1, 0.0)

    # Layer 2 (64 -> 128) + ReLU on the MXU, full f32 (compute is free; the
    # kernel is output-DMA bound).
    h2 = jnp.dot(w2_ref[...], h1, preferred_element_type=jnp.float32) + b2_ref[...]
    h2 = jnp.maximum(h2, 0.0)

    # Layer 3 (128 -> 512), no activation, split into output-channel chunks so
    # the full (512, tn) f32 result never exists as a temporary: each chunk's
    # matmul result goes straight to its slice of the output tile.
    for c0 in range(0, C3, L3_CHUNK):
        h3c = jnp.dot(w3_ref[c0:c0 + L3_CHUNK, :], h2,
                      preferred_element_type=jnp.float32)
        h3c = h3c + b3_ref[c0:c0 + L3_CHUNK, :]
        o_ref[c0:c0 + L3_CHUNK, :] = h3c.astype(o_ref.dtype)


def _embed_ncw(x_ncw, w1, b1, w2, b2, w3, b3, *, tn, out_dtype):
    """x_ncw: (B2, D, N) f32  ->  (B2, 512, N) out_dtype, computed tile-by-tile."""
    B2, D, N = x_ncw.shape
    tn = min(tn, N)                       # full-dim block if N is small
    # v7x has 2 TensorCores sharing HBM: keep >= 4 parallel grid steps when B
    # and N are small rather than letting one core idle (no-op on v5e/v6e).
    while B2 * pl.cdiv(N, tn) < 4 and tn >= 512 and tn % 256 == 0:
        tn //= 2
    grid = (B2, pl.cdiv(N, tn))

    # Explicit scoped-VMEM budget: double-buffered I/O tiles + intermediates,
    # with margin.  (v5e's 16 MiB scoped default would otherwise block tn>=2048;
    # clamp the ceiling so it stays safe on v7x's 64 MiB physical VMEM.)
    out_isz = jnp.dtype(out_dtype).itemsize
    vmem_est = (2 * C3 * tn * out_isz          # double-buffered output tile
                + 2 * 8 * tn * 4               # double-buffered input tile (padded)
                + (C1 + C2 + L3_CHUNK) * tn * 4)  # h1 / h2 / layer-3 chunk
    vmem_limit = int(1.5 * vmem_est) + (4 << 20)
    vmem_limit = max(min(vmem_limit, 64 << 20), 32 << 20)

    wmap = lambda b, j: (0, 0)            # weights/biases: same block every step

    return pl.pallas_call(
        _embed_kernel,
        out_shape=jax.ShapeDtypeStruct((B2, C3, N), out_dtype),
        grid_spec=pltpu.PrefetchScalarGridSpec(
            num_scalar_prefetch=0,
            grid=grid,
            in_specs=[
                pl.BlockSpec((None, D, tn), lambda b, j: (b, 0, j)),  # point tile
                pl.BlockSpec((C1, D), wmap),    # W1^T  (64, 3)    f32
                pl.BlockSpec((C1, 1), wmap),    # b1    (64, 1)    f32
                pl.BlockSpec((C2, C1), wmap),   # W2^T  (128, 64)  f32
                pl.BlockSpec((C2, 1), wmap),    # b2    (128, 1)   f32
                pl.BlockSpec((C3, C2), wmap),   # W3^T  (512, 128) f32
                pl.BlockSpec((C3, 1), wmap),    # b3    (512, 1)   f32
            ],
            out_specs=pl.BlockSpec((None, C3, tn), lambda b, j: (b, 0, j)),
        ),
        compiler_params=pltpu.CompilerParams(
            dimension_semantics=("parallel", "parallel"),
            vmem_limit_bytes=vmem_limit,
        ),
    )(x_ncw, w1, b1, w2, b2, w3, b3)


@functools.partial(jax.jit, static_argnames=("tn", "out_dtype"))
def initial_h_forward(src, tgt, params, *, tn=2048, out_dtype=jnp.float32):
    """src, tgt: (B, N, D).  Returns (h_src, h_tgt), each (B, 512, N).

    out_dtype=jnp.bfloat16 halves the dominant output writeback stream
    (~1.8-2x end-to-end) if the downstream consumer accepts bf16; the default
    stays f32 to match the PyTorch module exactly.
    """
    B, N, D = src.shape
    # Fuse src & tgt and present the (2B, D, N) layout the kernel wants; with
    # D=3 this is a tiny transpose, while the 512-channel output needs none.
    x = jnp.transpose(jnp.concatenate([src, tgt], axis=0), (0, 2, 1))  # (2B, D, N)
    h = _embed_ncw(x, params["w1"], params["b1"], params["w2"], params["b2"],
                   params["w3"], params["b3"], tn=tn, out_dtype=out_dtype)
    return h[:B], h[B:]


def init_params(key):
    """Deterministic synthetic Conv1d(kernel_size=1) weights.

    PyTorch Conv1d weight is (Cout, Cin, 1); we store the (Cout, Cin) matrix
    directly (used as W @ x with channels on sublanes). Biases are (Cout, 1).
    """
    ks = jax.random.split(key, 6)

    def w(kk, cin, cout):
        s = float(cin) ** -0.5
        return jax.random.uniform(kk, (cout, cin), jnp.float32, -s, s)

    def b(kk, cin, cout):
        s = float(cin) ** -0.5
        return jax.random.uniform(kk, (cout, 1), jnp.float32, -s, s)

    return {
        "w1": w(ks[0], IN_CHANNELS, C1), "b1": b(ks[1], IN_CHANNELS, C1),
        "w2": w(ks[2], C1, C2),          "b2": b(ks[3], C1, C2),
        "w3": w(ks[4], C2, C3),          "b3": b(ks[5], C2, C3),
    }


def _reference_forward(src, tgt, params):
    """Plain-JAX f32 reference (PyTorch-equivalent math)."""
    w1, b1 = params["w1"], params["b1"][:, 0]
    w2, b2 = params["w2"], params["b2"][:, 0]
    w3, b3 = params["w3"], params["b3"][:, 0]

    def emb(x):                                  # x: (B, N, D)
        h = jnp.maximum(x @ w1.T + b1, 0.0)
        h = jnp.maximum(h @ w2.T + b2, 0.0)
        h = h @ w3.T + b3
        return jnp.transpose(h, (0, 2, 1))       # (B, 512, N)

    return emb(src), emb(tgt)


if __name__ == "__main__":
    key = jax.random.PRNGKey(0)
    k_params, k_src, k_tgt = jax.random.split(key, 3)

    B, N, D = 2, 256, IN_CHANNELS
    src = jax.random.normal(k_src, (B, N, D), jnp.float32)
    tgt = jax.random.normal(k_tgt, (B, N, D), jnp.float32)

    params = init_params(k_params)

    h_src, h_tgt = initial_h_forward(src, tgt, params)
    h_src = jax.block_until_ready(h_src)
    h_tgt = jax.block_until_ready(h_tgt)

    assert h_src.shape == (B, C3, N), h_src.shape
    assert h_tgt.shape == (B, C3, N), h_tgt.shape

    # Full-f32 pipeline now -> tight check against the PyTorch-equivalent math.
    ref_src, ref_tgt = _reference_forward(src, tgt, params)
    assert jnp.allclose(h_src, ref_src, atol=3e-3, rtol=3e-3)
    assert jnp.allclose(h_tgt, ref_tgt, atol=3e-3, rtol=3e-3)

    print("KERNEL_OK")
</pallas_src>

<mosaic_0001>
module attributes {stable_mosaic.version = 11 : i64} {
  func.func @_embed_kernel(%arg0: i32, %arg1: i32, %arg2: memref<1x3x256xf32, #tpu.memory_space<vmem>>, %arg3: memref<64x3xf32, #tpu.memory_space<vmem>>, %arg4: memref<64x1xf32, #tpu.memory_space<vmem>>, %arg5: memref<128x64xf32, #tpu.memory_space<vmem>>, %arg6: memref<128x1xf32, #tpu.memory_space<vmem>>, %arg7: memref<512x128xf32, #tpu.memory_space<vmem>>, %arg8: memref<512x1xf32, #tpu.memory_space<vmem>>, %arg9: memref<1x512x256xf32, #tpu.memory_space<vmem>>) attributes {dimension_semantics = [#tpu.dimension_semantics<parallel>, #tpu.dimension_semantics<parallel>], iteration_bounds = array<i64: 4, 1>, scalar_prefetch = 0 : i64, scratch_operands = 0 : i64, tpu.core_type = #tpu.core_type<tc>, window_params = [{transform_indices = @transform_0, window_bounds = array<i64: 1, 3, 256>}, {pipeline_mode = #tpu.pipeline_mode<synchronous>, transform_indices = @transform_1, window_bounds = array<i64: 64, 3>}, {pipeline_mode = #tpu.pipeline_mode<synchronous>, transform_indices = @transform_2, window_bounds = array<i64: 64, 1>}, {pipeline_mode = #tpu.pipeline_mode<synchronous>, transform_indices = @transform_3, window_bounds = array<i64: 128, 64>}, {pipeline_mode = #tpu.pipeline_mode<synchronous>, transform_indices = @transform_4, window_bounds = array<i64: 128, 1>}, {pipeline_mode = #tpu.pipeline_mode<synchronous>, transform_indices = @transform_5, window_bounds = array<i64: 512, 128>}, {pipeline_mode = #tpu.pipeline_mode<synchronous>, transform_indices = @transform_6, window_bounds = array<i64: 512, 1>}, {transform_indices = @transform_7, window_bounds = array<i64: 1, 512, 256>}]} {
    %c0 = arith.constant 0 : index
    %c0_0 = arith.constant 0 : index
    %c0_1 = arith.constant 0 : index
    %0 = vector.load %arg2[%c0, %c0_0, %c0_1] : memref<1x3x256xf32, #tpu.memory_space<vmem>>, vector<1x3x256xf32>
    %1 = vector.shape_cast %0 : vector<1x3x256xf32> to vector<3x256xf32>
    %c0_2 = arith.constant 0 : index
    %c0_3 = arith.constant 0 : index
    %2 = vector.load %arg3[%c0_2, %c0_3] : memref<64x3xf32, #tpu.memory_space<vmem>>, vector<64x3xf32>
    %c0_4 = arith.constant 0 : index
    %c0_5 = arith.constant 0 : index
    %3 = vector.load %arg4[%c0_4, %c0_5] : memref<64x1xf32, #tpu.memory_space<vmem>>, vector<64x1xf32>
    %4 = vector.shape_cast %3 : vector<64x1xf32> to vector<64x1xf32>
    %5 = vector.broadcast %4 : vector<64x1xf32> to vector<64x256xf32>
    %6 = vector.extract_strided_slice %2 {offsets = [0, 0], sizes = [64, 1], strides = [1, 1]} : vector<64x3xf32> to vector<64x1xf32>
    %7 = vector.extract_strided_slice %1 {offsets = [0, 0], sizes = [1, 256], strides = [1, 1]} : vector<3x256xf32> to vector<1x256xf32>
    %8 = vector.broadcast %6 : vector<64x1xf32> to vector<64x256xf32>
    %9 = vector.broadcast %7 : vector<1x256xf32> to vector<64x256xf32>
    %10 = arith.mulf %8, %9 : vector<64x256xf32>
    %11 = arith.addf %5, %10 : vector<64x256xf32>
    %12 = vector.extract_strided_slice %2 {offsets = [0, 1], sizes = [64, 1], strides = [1, 1]} : vector<64x3xf32> to vector<64x1xf32>
    %13 = vector.extract_strided_slice %1 {offsets = [1, 0], sizes = [1, 256], strides = [1, 1]} : vector<3x256xf32> to vector<1x256xf32>
    %14 = vector.broadcast %12 : vector<64x1xf32> to vector<64x256xf32>
    %15 = vector.broadcast %13 : vector<1x256xf32> to vector<64x256xf32>
    %16 = arith.mulf %14, %15 : vector<64x256xf32>
    %17 = arith.addf %11, %16 : vector<64x256xf32>
    %18 = vector.extract_strided_slice %2 {offsets = [0, 2], sizes = [64, 1], strides = [1, 1]} : vector<64x3xf32> to vector<64x1xf32>
    %19 = vector.extract_strided_slice %1 {offsets = [2, 0], sizes = [1, 256], strides = [1, 1]} : vector<3x256xf32> to vector<1x256xf32>
    %20 = vector.broadcast %18 : vector<64x1xf32> to vector<64x256xf32>
    %21 = vector.broadcast %19 : vector<1x256xf32> to vector<64x256xf32>
    %22 = arith.mulf %20, %21 : vector<64x256xf32>
    %23 = arith.addf %17, %22 : vector<64x256xf32>
    %cst = arith.constant 0.000000e+00 : f32
    %24 = vector.broadcast %cst : f32 to vector<64x256xf32>
    %25 = arith.maximumf %23, %24 : vector<64x256xf32>
    %c0_6 = arith.constant 0 : index
    %c0_7 = arith.constant 0 : index
    %26 = vector.load %arg5[%c0_6, %c0_7] : memref<128x64xf32, #tpu.memory_space<vmem>>, vector<128x64xf32>
    %cst_8 = arith.constant dense<0.000000e+00> : vector<128x256xf32>
    %27 = tpu.matmul %26, %25, %cst_8 {dimension_numbers = #tpu.dot_dimension_numbers<[1], [0], [0], [1], [0, 0, 1, 1], [], []>} : vector<128x64xf32>, vector<64x256xf32>, vector<128x256xf32> -> vector<128x256xf32>
    %c0_9 = arith.constant 0 : index
    %c0_10 = arith.constant 0 : index
    %28 = vector.load %arg6[%c0_9, %c0_10] : memref<128x1xf32, #tpu.memory_space<vmem>>, vector<128x1xf32>
    %29 = vector.broadcast %28 : vector<128x1xf32> to vector<128x256xf32>
    %30 = arith.addf %27, %29 : vector<128x256xf32>
    %cst_11 = arith.constant 0.000000e+00 : f32
    %31 = vector.broadcast %cst_11 : f32 to vector<128x256xf32>
    %32 = arith.maximumf %30, %31 : vector<128x256xf32>
    %c0_12 = arith.constant 0 : index
    %c0_13 = arith.constant 0 : index
    %33 = vector.load %arg7[%c0_12, %c0_13] : memref<512x128xf32, #tpu.memory_space<vmem>>, vector<128x128xf32>
    %cst_14 = arith.constant dense<0.000000e+00> : vector<128x256xf32>
    %34 = tpu.matmul %33, %32, %cst_14 {dimension_numbers = #tpu.dot_dimension_numbers<[1], [0], [0], [1], [0, 0, 1, 1], [], []>} : vector<128x128xf32>, vector<128x256xf32>, vector<128x256xf32> -> vector<128x256xf32>
    %c0_15 = arith.constant 0 : index
    %c0_16 = arith.constant 0 : index
    %35 = vector.load %arg8[%c0_15, %c0_16] : memref<512x1xf32, #tpu.memory_space<vmem>>, vector<128x1xf32>
    %36 = vector.broadcast %35 : vector<128x1xf32> to vector<128x256xf32>
    %37 = arith.addf %34, %36 : vector<128x256xf32>
    %c0_17 = arith.constant 0 : index
    %c0_18 = arith.constant 0 : index
    %c0_19 = arith.constant 0 : index
    %38 = vector.load %arg9[%c0_17, %c0_18, %c0_19] : memref<1x512x256xf32, #tpu.memory_space<vmem>>, vector<1x128x256xf32>
    %39 = vector.shape_cast %38 : vector<1x128x256xf32> to vector<128x256xf32>
    %40 = vector.shape_cast %37 : vector<128x256xf32> to vector<1x128x256xf32>
    tpu.vector_store %arg9[%c0_17, %c0_18, %c0_19], %40 {strides = array<i32>} : memref<1x512x256xf32, #tpu.memory_space<vmem>>, vector<1x128x256xf32>,
    %c128 = arith.constant 128 : index
    %c0_20 = arith.constant 0 : index
    %41 = vector.load %arg7[%c128, %c0_20] : memref<512x128xf32, #tpu.memory_space<vmem>>, vector<128x128xf32>
    %cst_21 = arith.constant dense<0.000000e+00> : vector<128x256xf32>
    %42 = tpu.matmul %41, %32, %cst_21 {dimension_numbers = #tpu.dot_dimension_numbers<[1], [0], [0], [1], [0, 0, 1, 1], [], []>} : vector<128x128xf32>, vector<128x256xf32>, vector<128x256xf32> -> vector<128x256xf32>
    %c128_22 = arith.constant 128 : index
    %c0_23 = arith.constant 0 : index
    %43 = vector.load %arg8[%c128_22, %c0_23] : memref<512x1xf32, #tpu.memory_space<vmem>>, vector<128x1xf32>
    %44 = vector.broadcast %43 : vector<128x1xf32> to vector<128x256xf32>
    %45 = arith.addf %42, %44 : vector<128x256xf32>
    %c0_24 = arith.constant 0 : index
    %c128_25 = arith.constant 128 : index
    %c0_26 = arith.constant 0 : index
    %46 = vector.load %arg9[%c0_24, %c128_25, %c0_26] : memref<1x512x256xf32, #tpu.memory_space<vmem>>, vector<1x128x256xf32>
    %47 = vector.shape_cast %46 : vector<1x128x256xf32> to vector<128x256xf32>
    %48 = vector.shape_cast %45 : vector<128x256xf32> to vector<1x128x256xf32>
    tpu.vector_store %arg9[%c0_24, %c128_25, %c0_26], %48 {strides = array<i32>} : memref<1x512x256xf32, #tpu.memory_space<vmem>>, vector<1x128x256xf32>,
    %c256 = arith.constant 256 : index
    %c0_27 = arith.constant 0 : index
    %49 = vector.load %arg7[%c256, %c0_27] : memref<512x128xf32, #tpu.memory_space<vmem>>, vector<128x128xf32>
    %cst_28 = arith.constant dense<0.000000e+00> : vector<128x256xf32>
    %50 = tpu.matmul %49, %32, %cst_28 {dimension_numbers = #tpu.dot_dimension_numbers<[1], [0], [0], [1], [0, 0, 1, 1], [], []>} : vector<128x128xf32>, vector<128x256xf32>, vector<128x256xf32> -> vector<128x256xf32>
    %c256_29 = arith.constant 256 : index
    %c0_30 = arith.constant 0 : index
    %51 = vector.load %arg8[%c256_29, %c0_30] : memref<512x1xf32, #tpu.memory_space<vmem>>, vector<128x1xf32>
    %52 = vector.broadcast %51 : vector<128x1xf32> to vector<128x256xf32>
    %53 = arith.addf %50, %52 : vector<128x256xf32>
    %c0_31 = arith.constant 0 : index
    %c256_32 = arith.constant 256 : index
    %c0_33 = arith.constant 0 : index
    %54 = vector.load %arg9[%c0_31, %c256_32, %c0_33] : memref<1x512x256xf32, #tpu.memory_space<vmem>>, vector<1x128x256xf32>
    %55 = vector.shape_cast %54 : vector<1x128x256xf32> to vector<128x256xf32>
    %56 = vector.shape_cast %53 : vector<128x256xf32> to vector<1x128x256xf32>
    tpu.vector_store %arg9[%c0_31, %c256_32, %c0_33], %56 {strides = array<i32>} : memref<1x512x256xf32, #tpu.memory_space<vmem>>, vector<1x128x256xf32>,
    %c384 = arith.constant 384 : index
    %c0_34 = arith.constant 0 : index
    %57 = vector.load %arg7[%c384, %c0_34] : memref<512x128xf32, #tpu.memory_space<vmem>>, vector<128x128xf32>
    %cst_35 = arith.constant dense<0.000000e+00> : vector<128x256xf32>
    %58 = tpu.matmul %57, %32, %cst_35 {dimension_numbers = #tpu.dot_dimension_numbers<[1], [0], [0], [1], [0, 0, 1, 1], [], []>} : vector<128x128xf32>, vector<128x256xf32>, vector<128x256xf32> -> vector<128x256xf32>
    %c384_36 = arith.constant 384 : index
    %c0_37 = arith.constant 0 : index
    %59 = vector.load %arg8[%c384_36, %c0_37] : memref<512x1xf32, #tpu.memory_space<vmem>>, vector<128x1xf32>
    %60 = vector.broadcast %59 : vector<128x1xf32> to vector<128x256xf32>
    %61 = arith.addf %58, %60 : vector<128x256xf32>
    %c0_38 = arith.constant 0 : index
    %c384_39 = arith.constant 384 : index
    %c0_40 = arith.constant 0 : index
    %62 = vector.load %arg9[%c0_38, %c384_39, %c0_40] : memref<1x512x256xf32, #tpu.memory_space<vmem>>, vector<1x128x256xf32>
    %63 = vector.shape_cast %62 : vector<1x128x256xf32> to vector<128x256xf32>
    %64 = vector.shape_cast %61 : vector<128x256xf32> to vector<1x128x256xf32>
    tpu.vector_store %arg9[%c0_38, %c384_39, %c0_40], %64 {strides = array<i32>} : memref<1x512x256xf32, #tpu.memory_space<vmem>>, vector<1x128x256xf32>,
    return
  }
  func.func @transform_0(%arg0: i32, %arg1: i32) -> (i32, i32, i32) {
    %c0_i32 = arith.constant 0 : i32
    %c0_i32_0 = arith.constant 0 : i32
    return %arg0, %c0_i32, %arg1 : i32, i32, i32
  }
  func.func @transform_1(%arg0: i32, %arg1: i32) -> (i32, i32) {
    %c0_i32 = arith.constant 0 : i32
    %c0_i32_0 = arith.constant 0 : i32
    %c0_i32_1 = arith.constant 0 : i32
    return %c0_i32, %c0_i32_0 : i32, i32
  }
  func.func @transform_2(%arg0: i32, %arg1: i32) -> (i32, i32) {
    %c0_i32 = arith.constant 0 : i32
    %c0_i32_0 = arith.constant 0 : i32
    %c0_i32_1 = arith.constant 0 : i32
    return %c0_i32, %c0_i32_0 : i32, i32
  }
  func.func @transform_3(%arg0: i32, %arg1: i32) -> (i32, i32) {
    %c0_i32 = arith.constant 0 : i32
    %c0_i32_0 = arith.constant 0 : i32
    %c0_i32_1 = arith.constant 0 : i32
    return %c0_i32, %c0_i32_0 : i32, i32
  }
  func.func @transform_4(%arg0: i32, %arg1: i32) -> (i32, i32) {
    %c0_i32 = arith.constant 0 : i32
    %c0_i32_0 = arith.constant 0 : i32
    %c0_i32_1 = arith.constant 0 : i32
    return %c0_i32, %c0_i32_0 : i32, i32
  }
  func.func @transform_5(%arg0: i32, %arg1: i32) -> (i32, i32) {
    %c0_i32 = arith.constant 0 : i32
    %c0_i32_0 = arith.constant 0 : i32
    %c0_i32_1 = arith.constant 0 : i32
    return %c0_i32, %c0_i32_0 : i32, i32
  }
  func.func @transform_6(%arg0: i32, %arg1: i32) -> (i32, i32) {
    %c0_i32 = arith.constant 0 : i32
    %c0_i32_0 = arith.constant 0 : i32
    %c0_i32_1 = arith.constant 0 : i32
    return %c0_i32, %c0_i32_0 : i32, i32
  }
  func.func @transform_7(%arg0: i32, %arg1: i32) -> (i32, i32, i32) {
    %c0_i32 = arith.constant 0 : i32
    %c0_i32_0 = arith.constant 0 : i32
    return %arg0, %c0_i32, %arg1 : i32, i32, i32
  }
}

</mosaic_0001>

<llo_original>
// kernel: initial_h_forward.1
$region0: #{initial_h_forward.1}
  #allocation0 [shape = 'u32[]', space=smem, size = 0x4, offset = 0x4, fixed_abs, tag = 'smem constant byte address 0x4 - core index']
  #allocation1 [shape = 'u32[144,128]{1,0:T(1,128)}', space=vmem, size = 0x12000, scoped, tag = 'internal scratch']
  %s0 = inlined_call_operand.vmem [shape: f32[4,3,256], index: 0, kind: input, shape index: {}]
  %s1 = inlined_call_operand.vmem [shape: f32[64,3], index: 1, kind: input, shape index: {}]
  %s2 = inlined_call_operand.vmem [shape: f32[64,1], index: 2, kind: input, shape index: {}]
  %s3 = inlined_call_operand.vmem [shape: f32[128,64], index: 3, kind: input, shape index: {}]
  %s4 = inlined_call_operand.vmem [shape: f32[128,1], index: 4, kind: input, shape index: {}]
  %s5 = inlined_call_operand.hbm [shape: f32[512,128], index: 5, kind: input, shape index: {}]
  %s6 = inlined_call_operand.vmem [shape: f32[512,1], index: 6, kind: input, shape index: {}]
  %s7 = inlined_call_operand.vmem [shape: f32[4,512,256], index: 7, kind: output, shape index: {}]
  %s8 = sld [smem:[#allocation0]]
  $region65: #{initial_h_forward.1} parent=0
    _
  %s10 = ssub.s32 1, %s8
  %s11 = scalar_select 0, %s10, %s8
  $region1: #{initial_h_forward.1} parent=0
    #allocation2 [shape = 'u8[262144]{0}', space=vmem, size = 0x40000, scoped, tag = 'input window, operand 5, single buffered']
    #allocation3 [shape = 's32[2]{0}', space=sflag, size = 0x8, scoped, tag = 'scoped memory for initial_h_forward.1']
    %12 = vsyncpa [#allocation3], 0
    loop: start=0, step=1, limit=6
    $region2: #{initial_h_forward.1} parent=1 // loop_pre_header
      _
    $region3: #{initial_h_forward.1} parent=1 // loop_header
      %s14 = sphi 0, %s18
      %p15 = scmp.ge.s32.totalorder %s14, 6
      %s21 = sphi 0, %s33
      %s22 = sphi 0, %s29
      %s23 = sphi 0, %s21
      %s24 = sphi 0, %s22
      %s25 = sphi 0, %s23
      %s26 = sphi 0, %s24
      %s38 = sphi 0, %s40
      %s41 = sphi 0, %s38
      %s42 = sphi 0, %s41
      %s58 = sphi 0, %s42
      %s62 = sphi 0, %s62
      %s64 = sphi 0, %s62
      %s65 = sphi 0, %s64
      %s79 = sphi 0, %s65
      %s83 = sphi 0, %s83
      %s85 = sphi 0, %s83
      %s86 = sphi 0, %s85
      %s100 = sphi 0, %s86
      %s104 = sphi 0, %s104
      %s106 = sphi 0, %s104
      %s107 = sphi 0, %s106
      %s121 = sphi 0, %s107
      %s125 = sphi 0, %s125
      %s127 = sphi 0, %s125
      %s128 = sphi 0, %s127
      %s142 = sphi 0, %s128
      %s146 = sphi 0, %s146
      %s148 = sphi 0, %s146
      %s149 = sphi 0, %s148
      %s163 = sphi 0, %s149
      %s167 = sphi 0, %s167
      %s169 = sphi 0, %s167
      %s170 = sphi 0, %s169
      %s184 = sphi 0, %s170
      %s192 = sphi 0, %s194
      %s195 = sphi 0, %s192
      %s196 = sphi 0, %s195
      %s212 = sphi 0, %s196
    $region4: #{initial_h_forward.1} parent=1 // loop_header_branch
      %17 = sbr.rel (%p15) target = $region8
    $region5: #{initial_h_forward.1} parent=1 // loop_body
      %s19 = ssub.s32 %s14, 1
      %s20 = ssub.s32 %s14, 2
      %s27 = sadd.s32 1, %s22
      %p28 = scmp.ge.s32.totalorder %s27, 1
      %s29 = scalar_select %p28, 0, %s27
      %s30 = sadd.s32 1, %s21
      %s31 = scalar_select %p28, %s30, %s21
      %p32 = scmp.ge.s32.totalorder %s31, 4
      %s33 = scalar_select %p32, 0, %s31
      %s34 = ssub.s32 %s21, %s33
      %s35 = ssub.s32 %s22, %s29
      %s36 = sor.u32 %s34, %s35
      %p37 = scmp.eq.s32.totalorder %s36, 0
      %s39 = sadd.s32 %s38, 1
      %s40 = scalar_select %p37, %s38, %s39
      %p43 = pneg %p37
      %p44 = scmp.eq.s32.totalorder %s14, 3
      %p45 = por %p43, %p44
      %p46 = scmp.ne.s32.totalorder %s38, %s41
      %p47 = scmp.eq.s32.totalorder %s14, 0
      %p48 = por %p46, %p47
      %p49 = scmp.ne.s32.totalorder %s38, %s41
      %p50 = scmp.eq.s32.totalorder %s19, 3
      %p51 = por %p49, %p50
      %p52 = scmp.ne.s32.totalorder %s41, %s42
      %p53 = scmp.eq.s32.totalorder %s19, 0
      %p54 = por %p52, %p53
      %p55 = scmp.ne.s32.totalorder %s41, %s42
      %p56 = scmp.eq.s32.totalorder %s20, 3
      %p57 = por %p55, %p56
      %p59 = scmp.ne.s32.totalorder %s42, %s58
      %p60 = scmp.eq.s32.totalorder %s20, 0
      %p61 = por %p59, %p60
      %s63 = sadd.s32 %s62, 1
      %p66 = scmp.eq.s32.totalorder %s14, 3
      %p67 = scmp.ne.s32.totalorder %s62, %s64
      %p68 = scmp.eq.s32.totalorder %s14, 0
      %p69 = por %p67, %p68
      %p70 = scmp.ne.s32.totalorder %s62, %s64
      %p71 = scmp.eq.s32.totalorder %s19, 3
      %p72 = por %p70, %p71
      %p73 = scmp.ne.s32.totalorder %s64, %s65
      %p74 = scmp.eq.s32.totalorder %s19, 0
      %p75 = por %p73, %p74
      %p76 = scmp.ne.s32.totalorder %s64, %s65
      %p77 = scmp.eq.s32.totalorder %s20, 3
      %p78 = por %p76, %p77
      %p80 = scmp.ne.s32.totalorder %s65, %s79
      %p81 = scmp.eq.s32.totalorder %s20, 0
      %p82 = por %p80, %p81
      %s84 = sadd.s32 %s83, 1
      %p87 = scmp.eq.s32.totalorder %s14, 3
      %p88 = scmp.ne.s32.totalorder %s83, %s85
      %p89 = scmp.eq.s32.totalorder %s14, 0
      %p90 = por %p88, %p89
      %p91 = scmp.ne.s32.totalorder %s83, %s85
      %p92 = scmp.eq.s32.totalorder %s19, 3
      %p93 = por %p91, %p92
      %p94 = scmp.ne.s32.totalorder %s85, %s86
      %p95 = scmp.eq.s32.totalorder %s19, 0
      %p96 = por %p94, %p95
      %p97 = scmp.ne.s32.totalorder %s85, %s86
      %p98 = scmp.eq.s32.totalorder %s20, 3
      %p99 = por %p97, %p98
      %p101 = scmp.ne.s32.totalorder %s86, %s100
      %p102 = scmp.eq.s32.totalorder %s20, 0
      %p103 = por %p101, %p102
      %s105 = sadd.s32 %s104, 1
      %p108 = scmp.eq.s32.totalorder %s14, 3
      %p109 = scmp.ne.s32.totalorder %s104, %s106
      %p110 = scmp.eq.s32.totalorder %s14, 0
      %p111 = por %p109, %p110
      %p112 = scmp.ne.s32.totalorder %s104, %s106
      %p113 = scmp.eq.s32.totalorder %s19, 3
      %p114 = por %p112, %p113
      %p115 = scmp.ne.s32.totalorder %s106, %s107
      %p116 = scmp.eq.s32.totalorder %s19, 0
      %p117 = por %p115, %p116
      %p118 = scmp.ne.s32.totalorder %s106, %s107
      %p119 = scmp.eq.s32.totalorder %s20, 3
      %p120 = por %p118, %p119
      %p122 = scmp.ne.s32.totalorder %s107, %s121
      %p123 = scmp.eq.s32.totalorder %s20, 0
      %p124 = por %p122, %p123
      %s126 = sadd.s32 %s125, 1
      %p129 = scmp.eq.s32.totalorder %s14, 3
      %p130 = scmp.ne.s32.totalorder %s125, %s127
      %p131 = scmp.eq.s32.totalorder %s14, 0
      %p132 = por %p130, %p131
      %p133 = scmp.ne.s32.totalorder %s125, %s127
      %p134 = scmp.eq.s32.totalorder %s19, 3
      %p135 = por %p133, %p134
      %p136 = scmp.ne.s32.totalorder %s127, %s128
      %p137 = scmp.eq.s32.totalorder %s19, 0
      %p138 = por %p136, %p137
      %p139 = scmp.ne.s32.totalorder %s127, %s128
      %p140 = scmp.eq.s32.totalorder %s20, 3
      %p141 = por %p139, %p140
      %p143 = scmp.ne.s32.totalorder %s128, %s142
      %p144 = scmp.eq.s32.totalorder %s20, 0
      %p145 = por %p143, %p144
      %s147 = sadd.s32 %s146, 1
      %p150 = scmp.eq.s32.totalorder %s14, 3
      %p151 = scmp.ne.s32.totalorder %s146, %s148
      %p152 = scmp.eq.s32.totalorder %s14, 0
      %p153 = por %p151, %p152
      %p154 = scmp.ne.s32.totalorder %s146, %s148
      %p155 = scmp.eq.s32.totalorder %s19, 3
      %p156 = por %p154, %p155
      %p157 = scmp.ne.s32.totalorder %s148, %s149
      %p158 = scmp.eq.s32.totalorder %s19, 0
      %p159 = por %p157, %p158
      %p160 = scmp.ne.s32.totalorder %s148, %s149
      %p161 = scmp.eq.s32.totalorder %s20, 3
      %p162 = por %p160, %p161
      %p164 = scmp.ne.s32.totalorder %s149, %s163
      %p165 = scmp.eq.s32.totalorder %s20, 0
      %p166 = por %p164, %p165
      %s168 = sadd.s32 %s167, 1
      %p171 = scmp.eq.s32.totalorder %s14, 3
      %p172 = scmp.ne.s32.totalorder %s167, %s169
      %p173 = scmp.eq.s32.totalorder %s14, 0
      %p174 = por %p172, %p173
      %p175 = scmp.ne.s32.totalorder %s167, %s169
      %p176 = scmp.eq.s32.totalorder %s19, 3
      %p177 = por %p175, %p176
      %p178 = scmp.ne.s32.totalorder %s169, %s170
      %p179 = scmp.eq.s32.totalorder %s19, 0
      %p180 = por %p178, %p179
      %p181 = scmp.ne.s32.totalorder %s169, %s170
      %p182 = scmp.eq.s32.totalorder %s20, 3
      %p183 = por %p181, %p182
      %p185 = scmp.ne.s32.totalorder %s170, %s184
      %p186 = scmp.eq.s32.totalorder %s20, 0
      %p187 = por %p185, %p186
      %s188 = ssub.s32 %s21, %s33
      %s189 = ssub.s32 %s22, %s29
      %s190 = sor.u32 %s188, %s189
      %p191 = scmp.eq.s32.totalorder %s190, 0
      %s193 = sadd.s32 %s192, 1
      %s194 = scalar_select %p191, %s192, %s193
      %p197 = pneg %p191
      %p198 = scmp.eq.s32.totalorder %s14, 3
      %p199 = por %p197, %p198
      %p200 = scmp.ne.s32.totalorder %s192, %s195
      %p201 = scmp.eq.s32.totalorder %s14, 0
      %p202 = por %p200, %p201
      %p203 = scmp.ne.s32.totalorder %s192, %s195
      %p204 = scmp.eq.s32.totalorder %s19, 3
      %p205 = por %p203, %p204
      %p206 = scmp.ne.s32.totalorder %s195, %s196
      %p207 = scmp.eq.s32.totalorder %s19, 0
      %p208 = por %p206, %p207
      %p209 = scmp.ne.s32.totalorder %s195, %s196
      %p210 = scmp.eq.s32.totalorder %s20, 3
      %p211 = por %p209, %p210
      %p213 = scmp.ne.s32.totalorder %s196, %s212
      %p214 = scmp.eq.s32.totalorder %s20, 0
      %p215 = por %p213, %p214
      %p216 = scmp.le.s32.totalorder 1, %s14
      %p217 = scmp.lt.s32.totalorder %s14, 5
      %p218 = pnand %p216, %p217
      %p219 = pneg %p218
      // Predicated region
      $region9: #{initial_h_forward.1} parent=5 // pred_check
        _
      $region10: #{initial_h_forward.1} parent=5 // pred_check_branch
        %221 = sbr.rel (%p218) target = $region12
      $region11: #{initial_h_forward.1} parent=5 // pred_region
        %s222 = ssub.s32 %s14, 1
        // Predicated region
        $region13: #{initial_h_forward.1} parent=11 // pred_check
          %p223 = pneg %p75
        $region14: #{initial_h_forward.1} parent=11 // pred_check_branch
          %225 = sbr.rel (%p223) target = $region16
        $region15: #{initial_h_forward.1} parent=11 // pred_region
          _
        $region16: #{initial_h_forward.1} parent=11 // pred_fallthru
          _
        // Predicated region
        $region17: #{initial_h_forward.1} parent=11 // pred_check
          %p226 = pneg %p96
        $region18: #{initial_h_forward.1} parent=11 // pred_check_branch
          %228 = sbr.rel (%p226) target = $region20
        $region19: #{initial_h_forward.1} parent=11 // pred_region
          _
        $region20: #{initial_h_forward.1} parent=11 // pred_fallthru
          _
        // Predicated region
        $region21: #{initial_h_forward.1} parent=11 // pred_check
          %p229 = pneg %p117
        $region22: #{initial_h_forward.1} parent=11 // pred_check_branch
          %231 = sbr.rel (%p229) target = $region24
        $region23: #{initial_h_forward.1} parent=11 // pred_region
          _
        $region24: #{initial_h_forward.1} parent=11 // pred_fallthru
          _
        // Predicated region
        $region25: #{initial_h_forward.1} parent=11 // pred_check
          %p232 = pneg %p138
        $region26: #{initial_h_forward.1} parent=11 // pred_check_branch
          %234 = sbr.rel (%p232) target = $region28
        $region27: #{initial_h_forward.1} parent=11 // pred_region
          _
        $region28: #{initial_h_forward.1} parent=11 // pred_fallthru
          _
        // Predicated region
        $region29: #{initial_h_forward.1} parent=11 // pred_check
          %p235 = pneg %p159
        $region30: #{initial_h_forward.1} parent=11 // pred_check_branch
          %237 = sbr.rel (%p235) target = $region32
        $region31: #{initial_h_forward.1} parent=11 // pred_region
          %s239 = ssub.s32 8192, 8192
          %240 = vsyncadd [#allocation3], %s239
          %s241 = sshll.u32 [#allocation2], 4
          %s242 = int_to_ptr.vmem [resolvable:$true] %s241
          %247 = dma.hbm_to_vmem [thread:$0]  %s5, 8192, %s242, [#allocation3], 128, 128, 8
        $region32: #{initial_h_forward.1} parent=11 // pred_fallthru
          _
        // Predicated region
        $region33: #{initial_h_forward.1} parent=11 // pred_check
          %p248 = pneg %p180
        $region34: #{initial_h_forward.1} parent=11 // pred_check_branch
          %250 = sbr.rel (%p248) target = $region36
        $region35: #{initial_h_forward.1} parent=11 // pred_region
          _
        $region36: #{initial_h_forward.1} parent=11 // pred_fallthru
          _
      $region12: #{initial_h_forward.1} parent=5 // pred_fallthru
        _
      %p251 = scmp.lt.s32.totalorder %s14, 4
      // Predicated region
      $region37: #{initial_h_forward.1} parent=5 // pred_check
        %p252 = pneg %p251
      $region38: #{initial_h_forward.1} parent=5 // pred_check_branch
        %254 = sbr.rel (%p252) target = $region40
      $region39: #{initial_h_forward.1} parent=5 // pred_region
        // Predicated region
        $region41: #{initial_h_forward.1} parent=39 // pred_check
          %p255 = pneg %p48
        $region42: #{initial_h_forward.1} parent=39 // pred_check_branch
          %257 = sbr.rel (%p255) target = $region44
        $region43: #{initial_h_forward.1} parent=39 // pred_region
          %s258 = smul.u32 2, %s22
          %p259 = scmp.lt.s32.totalorder %s21, 3
          %s260 = scalar_select %p259, %s21, 3
          %p261 = scmp.lt.s32.totalorder %s258, 1
          %s262 = scalar_select %p261, %s258, 1
          %s263 = smul.addr %s260, 2
          %s264 = sadd.s32 %s262, %s263
          %s265 = smul.addr %s264, 4
          %s266 = scalar_lea.vmem %s0, %s265
          %s267 = smul.u32 2, %s22
        $region44: #{initial_h_forward.1} parent=39 // pred_fallthru
          _
      $region40: #{initial_h_forward.1} parent=5 // pred_fallthru
        _
      %p268 = scmp.le.s32.totalorder 1, %s14
      %p269 = scmp.lt.s32.totalorder %s14, 5
      %p270 = pnand %p268, %p269
      %p271 = pneg %p270
      // Predicated region
      $region45: #{initial_h_forward.1} parent=5 // pred_check
        _
      $region46: #{initial_h_forward.1} parent=5 // pred_check_branch
        %273 = sbr.rel (%p270) target = $region48
      $region47: #{initial_h_forward.1} parent=5 // pred_region
        %s274 = ssub.s32 %s14, 1
        // Predicated region
        $region49: #{initial_h_forward.1} parent=47 // pred_check
          %p275 = pneg %p159
        $region50: #{initial_h_forward.1} parent=47 // pred_check_branch
          %277 = sbr.rel (%p275) target = $region52
        $region51: #{initial_h_forward.1} parent=47 // pred_region
          %278 = dma.done [#allocation3], 8192
        $region52: #{initial_h_forward.1} parent=47 // pred_fallthru
          _
        %s279 = smul.u32 2, %s24
        %p280 = scmp.lt.s32.totalorder %s23, 3
        %s281 = scalar_select %p280, %s23, 3
        %p282 = scmp.lt.s32.totalorder %s279, 1
        %s283 = scalar_select %p282, %s279, 1
        %s284 = smul.addr %s281, 2
        %s285 = sadd.s32 %s283, %s284
        %s286 = smul.addr %s285, 4
        %s287 = scalar_lea.vmem %s0, %s286
        %p288 = pneg %p54
        %p289 = pneg %p51
        %p290 = pneg %p75
        %p291 = pneg %p72
        %p292 = pneg %p96
        %p293 = pneg %p93
        %p294 = pneg %p117
        %p295 = pneg %p114
        %p296 = pneg %p138
        %p297 = pneg %p135
        %p298 = pneg %p159
        %p299 = pneg %p156
        %p300 = pneg %p180
        %p301 = pneg %p177
        %p302 = pneg %p208
        %p303 = pneg %p205
        %s304 = smul.u32 2, %s24
        %p305 = scmp.lt.s32.totalorder %s23, 3
        %s306 = scalar_select %p305, %s23, 3
        %p307 = scmp.lt.s32.totalorder %s304, 1
        %s308 = scalar_select %p307, %s304, 1
        %s309 = smul.addr %s306, 128
        %s310 = sadd.s32 %s308, %s309
        %s311 = smul.addr %s310, 8
        %s312 = scalar_lea.vmem %s7, %s311
        %s313 = smul.u32 2, %s24
        %p314 = scmp.lt.s32.totalorder %s23, 3
        %s315 = scalar_select %p314, %s23, 3
        %p316 = scmp.lt.s32.totalorder %s313, 1
        %s317 = scalar_select %p316, %s313, 1
        %s318 = smul.addr %s315, 2
        %s319 = sadd.s32 %s317, %s318
        %s320 = smul.addr %s319, 4
        %s321 = scalar_lea.vmem %s0, %s320
        %s322 = smul.u32 2, %s24
        %s323 = smul.u32 2, %s24
        %p324 = scmp.lt.s32.totalorder %s23, 3
        %s325 = scalar_select %p324, %s23, 3
        %p326 = scmp.lt.s32.totalorder %s323, 1
        %s327 = scalar_select %p326, %s323, 1
        %s328 = smul.addr %s325, 128
        %s329 = sadd.s32 %s327, %s328
        %s330 = smul.addr %s329, 8
        %s331 = scalar_lea.vmem %s7, %s330
        %s332 = smul.u32 2, %s24
        %v333 = vld [vmem:[%s321] sm:$0x77]
        %v334 = vld [vmem:[%s1] sm:$0xff]
        %v335 = vld [vmem:[%s1 + $0x8] sm:$0xff]
        %v336 = vld [vmem:[%s1 + $0x10] sm:$0xff]
        %v337 = vld [vmem:[%s1 + $0x18] sm:$0xff]
        %v338 = vld [vmem:[%s1 + $0x20] sm:$0xff]
        %v339 = vld [vmem:[%s1 + $0x28] sm:$0xff]
        %v340 = vld [vmem:[%s1 + $0x30] sm:$0xff]
        %v341 = vld [vmem:[%s1 + $0x38] sm:$0xff]
        %v342 = vld [vmem:[%s2] sm:$0xff]
        %v343 = vld [vmem:[%s2 + $0x8] sm:$0xff]
        %v344 = vld [vmem:[%s2 + $0x10] sm:$0xff]
        %v345 = vld [vmem:[%s2 + $0x18] sm:$0xff]
        %v346 = vld [vmem:[%s2 + $0x20] sm:$0xff]
        %v347 = vld [vmem:[%s2 + $0x28] sm:$0xff]
        %v348 = vld [vmem:[%s2 + $0x30] sm:$0xff]
        %v349 = vld [vmem:[%s2 + $0x38] sm:$0xff]
        %351 = vset.pattern.permute.xlu0 0
        %352 = vperm.xlu0 %351, %v342
        %v353 = vpop.permute.xlu0 %352
        %356 = vset.pattern.permute.xlu0 0
        %357 = vperm.xlu0 %356, %v343
        %v358 = vpop.permute.xlu0 %357
        %361 = vset.pattern.permute.xlu0 0
        %362 = vperm.xlu0 %361, %v344
        %v363 = vpop.permute.xlu0 %362
        %366 = vset.pattern.permute.xlu0 0
        %367 = vperm.xlu0 %366, %v345
        %v368 = vpop.permute.xlu0 %367
        %371 = vset.pattern.permute.xlu0 0
        %372 = vperm.xlu0 %371, %v346
        %v373 = vpop.permute.xlu0 %372
        %376 = vset.pattern.permute.xlu0 0
        %377 = vperm.xlu0 %376, %v347
        %v378 = vpop.permute.xlu0 %377
        %381 = vset.pattern.permute.xlu0 0
        %382 = vperm.xlu0 %381, %v348
        %v383 = vpop.permute.xlu0 %382
        %386 = vset.pattern.permute.xlu0 0
        %387 = vperm.xlu0 %386, %v349
        %v388 = vpop.permute.xlu0 %387
        %391 = vset.pattern.permute.xlu0 0
        %392 = vperm.xlu0 %391, %v334
        %v393 = vpop.permute.xlu0 %392
        %396 = vset.pattern.permute.xlu0 0
        %397 = vperm.xlu0 %396, %v335
        %v398 = vpop.permute.xlu0 %397
        %401 = vset.pattern.permute.xlu0 0
        %402 = vperm.xlu0 %401, %v336
        %v403 = vpop.permute.xlu0 %402
        %406 = vset.pattern.permute.xlu0 0
        %407 = vperm.xlu0 %406, %v337
        %v408 = vpop.permute.xlu0 %407
        %411 = vset.pattern.permute.xlu0 0
        %412 = vperm.xlu0 %411, %v338
        %v413 = vpop.permute.xlu0 %412
        %416 = vset.pattern.permute.xlu0 0
        %417 = vperm.xlu0 %416, %v339
        %v418 = vpop.permute.xlu0 %417
        %421 = vset.pattern.permute.xlu0 0
        %422 = vperm.xlu0 %421, %v340
        %v423 = vpop.permute.xlu0 %422
        %426 = vset.pattern.permute.xlu0 0
        %427 = vperm.xlu0 %426, %v341
        %v428 = vpop.permute.xlu0 %427
        %v431 = vlaneseq
        %v432 = vshrl.u32 %v431, 7
        %v433 = vsub.s32 0, %v432
        %v434 = vrot.slane %v333, %v433
        %v435 = vlaneseq
        %v436 = vshrl.u32 %v435, 7
        %v437 = vsub.s32 4, %v436
        %v438 = vrot.slane %v333, %v437
        %v441 = vlaneseq
        %v442 = vshrl.u32 %v441, 7
        %v443 = vsub.s32 0, %v442
        %v444 = vrot.slane %v434, %v443
        %v445 = vlaneseq
        %v446 = vshrl.u32 %v445, 7
        %v447 = vsub.s32 0, %v446
        %v448 = vrot.slane %v438, %v447
        %v449 = vmul.f32 %v393, %v444
        %v450 = vmul.f32 %v393, %v448
        %v451 = vmul.f32 %v398, %v444
        %v452 = vmul.f32 %v398, %v448
        %v453 = vmul.f32 %v403, %v444
        %v454 = vmul.f32 %v403, %v448
        %v455 = vmul.f32 %v408, %v444
        %v456 = vmul.f32 %v408, %v448
        %v457 = vmul.f32 %v413, %v444
        %v458 = vmul.f32 %v413, %v448
        %v459 = vmul.f32 %v418, %v444
        %v460 = vmul.f32 %v418, %v448
        %v461 = vmul.f32 %v423, %v444
        %v462 = vmul.f32 %v423, %v448
        %v463 = vmul.f32 %v428, %v444
        %v464 = vmul.f32 %v428, %v448
        %v465 = vadd.f32 %v353, %v449
        %v466 = vadd.f32 %v353, %v450
        %v467 = vadd.f32 %v358, %v451
        %v468 = vadd.f32 %v358, %v452
        %v469 = vadd.f32 %v363, %v453
        %v470 = vadd.f32 %v363, %v454
        %v471 = vadd.f32 %v368, %v455
        %v472 = vadd.f32 %v368, %v456
        %v473 = vadd.f32 %v373, %v457
        %v474 = vadd.f32 %v373, %v458
        %v475 = vadd.f32 %v378, %v459
        %v476 = vadd.f32 %v378, %v460
        %v477 = vadd.f32 %v383, %v461
        %v478 = vadd.f32 %v383, %v462
        %v479 = vadd.f32 %v388, %v463
        %v480 = vadd.f32 %v388, %v464
        %481 = vset.pattern.permute.xlu0 1
        %482 = vperm.xlu0 %481, %v334
        %v483 = vpop.permute.xlu0 %482
        %485 = vset.pattern.permute.xlu0 1
        %486 = vperm.xlu0 %485, %v335
        %v487 = vpop.permute.xlu0 %486
        %489 = vset.pattern.permute.xlu0 1
        %490 = vperm.xlu0 %489, %v336
        %v491 = vpop.permute.xlu0 %490
        %493 = vset.pattern.permute.xlu0 1
        %494 = vperm.xlu0 %493, %v337
        %v495 = vpop.permute.xlu0 %494
        %497 = vset.pattern.permute.xlu0 1
        %498 = vperm.xlu0 %497, %v338
        %v499 = vpop.permute.xlu0 %498
        %501 = vset.pattern.permute.xlu0 1
        %502 = vperm.xlu0 %501, %v339
        %v503 = vpop.permute.xlu0 %502
        %505 = vset.pattern.permute.xlu0 1
        %506 = vperm.xlu0 %505, %v340
        %v507 = vpop.permute.xlu0 %506
        %509 = vset.pattern.permute.xlu0 1
        %510 = vperm.xlu0 %509, %v341
        %v511 = vpop.permute.xlu0 %510
        %v513 = vlaneseq
        %v514 = vshrl.u32 %v513, 7
        %v515 = vsub.s32 1, %v514
        %v516 = vrot.slane %v333, %v515
        %v517 = vlaneseq
        %v518 = vshrl.u32 %v517, 7
        %v519 = vsub.s32 5, %v518
        %v520 = vrot.slane %v333, %v519
        %v523 = vlaneseq
        %v524 = vshrl.u32 %v523, 7
        %v525 = vsub.s32 1, %v524
        %v526 = vrot.slane %v516, %v525
        %v527 = vlaneseq
        %v528 = vshrl.u32 %v527, 7
        %v529 = vsub.s32 1, %v528
        %v530 = vrot.slane %v520, %v529
        %v531 = vmul.f32 %v483, %v526
        %v532 = vmul.f32 %v483, %v530
        %v533 = vmul.f32 %v487, %v526
        %v534 = vmul.f32 %v487, %v530
        %v535 = vmul.f32 %v491, %v526
        %v536 = vmul.f32 %v491, %v530
        %v537 = vmul.f32 %v495, %v526
        %v538 = vmul.f32 %v495, %v530
        %v539 = vmul.f32 %v499, %v526
        %v540 = vmul.f32 %v499, %v530
        %v541 = vmul.f32 %v503, %v526
        %v542 = vmul.f32 %v503, %v530
        %v543 = vmul.f32 %v507, %v526
        %v544 = vmul.f32 %v507, %v530
        %v545 = vmul.f32 %v511, %v526
        %v546 = vmul.f32 %v511, %v530
        %v547 = vadd.f32 %v465, %v531
        %v548 = vadd.f32 %v466, %v532
        %v549 = vadd.f32 %v467, %v533
        %v550 = vadd.f32 %v468, %v534
        %v551 = vadd.f32 %v469, %v535
        %v552 = vadd.f32 %v470, %v536
        %v553 = vadd.f32 %v471, %v537
        %v554 = vadd.f32 %v472, %v538
        %v555 = vadd.f32 %v473, %v539
        %v556 = vadd.f32 %v474, %v540
        %v557 = vadd.f32 %v475, %v541
        %v558 = vadd.f32 %v476, %v542
        %v559 = vadd.f32 %v477, %v543
        %v560 = vadd.f32 %v478, %v544
        %v561 = vadd.f32 %v479, %v545
        %v562 = vadd.f32 %v480, %v546
        %563 = vset.pattern.permute.xlu0 2
        %564 = vperm.xlu0 %563, %v334
        %v565 = vpop.permute.xlu0 %564
        %567 = vset.pattern.permute.xlu0 2
        %568 = vperm.xlu0 %567, %v335
        %v569 = vpop.permute.xlu0 %568
        %571 = vset.pattern.permute.xlu0 2
        %572 = vperm.xlu0 %571, %v336
        %v573 = vpop.permute.xlu0 %572
        %575 = vset.pattern.permute.xlu0 2
        %576 = vperm.xlu0 %575, %v337
        %v577 = vpop.permute.xlu0 %576
        %579 = vset.pattern.permute.xlu0 2
        %580 = vperm.xlu0 %579, %v338
        %v581 = vpop.permute.xlu0 %580
        %583 = vset.pattern.permute.xlu0 2
        %584 = vperm.xlu0 %583, %v339
        %v585 = vpop.permute.xlu0 %584
        %587 = vset.pattern.permute.xlu0 2
        %588 = vperm.xlu0 %587, %v340
        %v589 = vpop.permute.xlu0 %588
        %591 = vset.pattern.permute.xlu0 2
        %592 = vperm.xlu0 %591, %v341
        %v593 = vpop.permute.xlu0 %592
        %v595 = vlaneseq
        %v596 = vshrl.u32 %v595, 7
        %v597 = vsub.s32 2, %v596
        %v598 = vrot.slane %v333, %v597
        %v599 = vlaneseq
        %v600 = vshrl.u32 %v599, 7
        %v601 = vsub.s32 6, %v600
        %v602 = vrot.slane %v333, %v601
        %v605 = vlaneseq
        %v606 = vshrl.u32 %v605, 7
        %v607 = vsub.s32 2, %v606
        %v608 = vrot.slane %v598, %v607
        %v609 = vlaneseq
        %v610 = vshrl.u32 %v609, 7
        %v611 = vsub.s32 2, %v610
        %v612 = vrot.slane %v602, %v611
        %v613 = vmul.f32 %v565, %v608
        %v614 = vmul.f32 %v565, %v612
        %v615 = vmul.f32 %v569, %v608
        %v616 = vmul.f32 %v569, %v612
        %v617 = vmul.f32 %v573, %v608
        %v618 = vmul.f32 %v573, %v612
        %v619 = vmul.f32 %v577, %v608
        %v620 = vmul.f32 %v577, %v612
        %v621 = vmul.f32 %v581, %v608
        %v622 = vmul.f32 %v581, %v612
        %v623 = vmul.f32 %v585, %v608
        %v624 = vmul.f32 %v585, %v612
        %v625 = vmul.f32 %v589, %v608
        %v626 = vmul.f32 %v589, %v612
        %v627 = vmul.f32 %v593, %v608
        %v628 = vmul.f32 %v593, %v612
        %v629 = vadd.f32 %v547, %v613
        %v630 = vadd.f32 %v548, %v614
        %v631 = vadd.f32 %v549, %v615
        %v632 = vadd.f32 %v550, %v616
        %v633 = vadd.f32 %v551, %v617
        %v634 = vadd.f32 %v552, %v618
        %v635 = vadd.f32 %v553, %v619
        %v636 = vadd.f32 %v554, %v620
        %v637 = vadd.f32 %v555, %v621
        %v638 = vadd.f32 %v556, %v622
        %v639 = vadd.f32 %v557, %v623
        %v640 = vadd.f32 %v558, %v624
        %v641 = vadd.f32 %v559, %v625
        %v642 = vadd.f32 %v560, %v626
        %v643 = vadd.f32 %v561, %v627
        %v644 = vadd.f32 %v562, %v628
        %v645 = vmax.f32 %v629, 0.0
        %v646 = vmax.f32 %v630, 0.0
        %v647 = vmax.f32 %v631, 0.0
        %v648 = vmax.f32 %v632, 0.0
        %v649 = vmax.f32 %v633, 0.0
        %v650 = vmax.f32 %v634, 0.0
        %v651 = vmax.f32 %v635, 0.0
        %v652 = vmax.f32 %v636, 0.0
        %v653 = vmax.f32 %v637, 0.0
        %v654 = vmax.f32 %v638, 0.0
        %v655 = vmax.f32 %v639, 0.0
        %v656 = vmax.f32 %v640, 0.0
        %v657 = vmax.f32 %v641, 0.0
        %v658 = vmax.f32 %v642, 0.0
        %v659 = vmax.f32 %v643, 0.0
        %v660 = vmax.f32 %v644, 0.0
        %v661 = vld [vmem:[%s3] sm:$0xff]
        %v662 = vld [vmem:[%s3 + $0x8] sm:$0xff]
        %v663 = vld [vmem:[%s3 + $0x10] sm:$0xff]
        %v664 = vld [vmem:[%s3 + $0x18] sm:$0xff]
        %v665 = vld [vmem:[%s3 + $0x20] sm:$0xff]
        %v666 = vld [vmem:[%s3 + $0x28] sm:$0xff]
        %v667 = vld [vmem:[%s3 + $0x30] sm:$0xff]
        %v668 = vld [vmem:[%s3 + $0x38] sm:$0xff]
        %v669 = vld [vmem:[%s3 + $0x40] sm:$0xff]
        %v670 = vld [vmem:[%s3 + $0x48] sm:$0xff]
        %v671 = vld [vmem:[%s3 + $0x50] sm:$0xff]
        %v672 = vld [vmem:[%s3 + $0x58] sm:$0xff]
        %v673 = vld [vmem:[%s3 + $0x60] sm:$0xff]
        %v674 = vld [vmem:[%s3 + $0x68] sm:$0xff]
        %v675 = vld [vmem:[%s3 + $0x70] sm:$0xff]
        %v676 = vld [vmem:[%s3 + $0x78] sm:$0xff]
        %v677 = vld [vmem:[%s4] sm:$0xff]
        %v678 = vld [vmem:[%s4 + $0x8] sm:$0xff]
        %v679 = vld [vmem:[%s4 + $0x10] sm:$0xff]
        %v680 = vld [vmem:[%s4 + $0x18] sm:$0xff]
        %v681 = vld [vmem:[%s4 + $0x20] sm:$0xff]
        %v682 = vld [vmem:[%s4 + $0x28] sm:$0xff]
        %v683 = vld [vmem:[%s4 + $0x30] sm:$0xff]
        %v684 = vld [vmem:[%s4 + $0x38] sm:$0xff]
        %v685 = vld [vmem:[%s4 + $0x40] sm:$0xff]
        %v686 = vld [vmem:[%s4 + $0x48] sm:$0xff]
        %v687 = vld [vmem:[%s4 + $0x50] sm:$0xff]
        %v688 = vld [vmem:[%s4 + $0x58] sm:$0xff]
        %v689 = vld [vmem:[%s4 + $0x60] sm:$0xff]
        %v690 = vld [vmem:[%s4 + $0x68] sm:$0xff]
        %v691 = vld [vmem:[%s4 + $0x70] sm:$0xff]
        %v692 = vld [vmem:[%s4 + $0x78] sm:$0xff]
        %694 = vset.pattern.permute.xlu0 0
        %695 = vperm.xlu0 %694, %v677
        %v696 = vpop.permute.xlu0 %695
        %699 = vset.pattern.permute.xlu0 0
        %700 = vperm.xlu0 %699, %v678
        %v701 = vpop.permute.xlu0 %700
        %704 = vset.pattern.permute.xlu0 0
        %705 = vperm.xlu0 %704, %v679
        %v706 = vpop.permute.xlu0 %705
        %709 = vset.pattern.permute.xlu0 0
        %710 = vperm.xlu0 %709, %v680
        %v711 = vpop.permute.xlu0 %710
        %714 = vset.pattern.permute.xlu0 0
        %715 = vperm.xlu0 %714, %v681
        %v716 = vpop.permute.xlu0 %715
        %719 = vset.pattern.permute.xlu0 0
        %720 = vperm.xlu0 %719, %v682
        %v721 = vpop.permute.xlu0 %720
        %724 = vset.pattern.permute.xlu0 0
        %725 = vperm.xlu0 %724, %v683
        %v726 = vpop.permute.xlu0 %725
        %729 = vset.pattern.permute.xlu0 0
        %730 = vperm.xlu0 %729, %v684
        %v731 = vpop.permute.xlu0 %730
        %734 = vset.pattern.permute.xlu0 0
        %735 = vperm.xlu0 %734, %v685
        %v736 = vpop.permute.xlu0 %735
        %739 = vset.pattern.permute.xlu0 0
        %740 = vperm.xlu0 %739, %v686
        %v741 = vpop.permute.xlu0 %740
        %744 = vset.pattern.permute.xlu0 0
        %745 = vperm.xlu0 %744, %v687
        %v746 = vpop.permute.xlu0 %745
        %749 = vset.pattern.permute.xlu0 0
        %750 = vperm.xlu0 %749, %v688
        %v751 = vpop.permute.xlu0 %750
        %754 = vset.pattern.permute.xlu0 0
        %755 = vperm.xlu0 %754, %v689
        %v756 = vpop.permute.xlu0 %755
        %759 = vset.pattern.permute.xlu0 0
        %760 = vperm.xlu0 %759, %v690
        %v761 = vpop.permute.xlu0 %760
        %764 = vset.pattern.permute.xlu0 0
        %765 = vperm.xlu0 %764, %v691
        %v766 = vpop.permute.xlu0 %765
        %769 = vset.pattern.permute.xlu0 0
        %770 = vperm.xlu0 %769, %v692
        %v771 = vpop.permute.xlu0 %770
        %vm773 = vcmask 523264
        %v775 = vsel %vm773, %v661, 0
        %v778 = vsel %vm773, %v662, 0
        %v781 = vsel %vm773, %v663, 0
        %v784 = vsel %vm773, %v664, 0
        %v787 = vsel %vm773, %v665, 0
        %v790 = vsel %vm773, %v666, 0
        %v793 = vsel %vm773, %v667, 0
        %v796 = vsel %vm773, %v668, 0
        %v799 = vsel %vm773, %v669, 0
        %v802 = vsel %vm773, %v670, 0
        %v805 = vsel %vm773, %v671, 0
        %v808 = vsel %vm773, %v672, 0
        %v811 = vsel %vm773, %v673, 0
        %v814 = vsel %vm773, %v674, 0
        %v817 = vsel %vm773, %v675, 0
        %v820 = vsel %vm773, %v676, 0
        %822 = vmatprep.subr.mxu0 0.0
        %823 = vmatpush1.msra.mxu0 0.0
        %824 = vmatprep.subr.mxu0 0.0
        %825 = vmatpush1.msra.mxu0 0.0
        %826 = vmatprep.subr.mxu0 0.0
        %827 = vmatpush1.msra.mxu0 0.0
        %828 = vmatprep.subr.mxu0 0.0
        %829 = vmatpush1.msra.mxu0 0.0
        %830 = vmatprep.subr.mxu0 0.0
        %831 = vmatpush1.msra.mxu0 0.0
        %832 = vmatprep.subr.mxu0 0.0
        %833 = vmatpush1.msra.mxu0 0.0
        %834 = vmatprep.subr.mxu0 0.0
        %835 = vmatpush1.msra.mxu0 0.0
        %836 = vmatprep.subr.mxu0 0.0
        %837 = vmatpush1.msra.mxu0 0.0
        %838 = vmatprep.subr.mxu0 %v660
        %839 = vmatpush1.msra.mxu0 %v659
        %840 = vmatprep.subr.mxu0 %v658
        %841 = vmatpush1.msra.mxu0 %v657
        %842 = vmatprep.subr.mxu0 %v656
        %843 = vmatpush1.msra.mxu0 %v655
        %844 = vmatprep.subr.mxu0 %v654
        %845 = vmatpush1.msra.mxu0 %v653
        %846 = vmatprep.subr.mxu0 %v652
        %847 = vmatpush1.msra.mxu0 %v651
        %848 = vmatprep.subr.mxu0 %v650
        %849 = vmatpush1.msra.mxu0 %v649
        %850 = vmatprep.subr.mxu0 %v648
        %851 = vmatpush1.msra.mxu0 %v647
        %852 = vmatprep.subr.mxu0 %v646
        %853 = vmatpush1.msra.mxu0 %v645
        %854 = vmatprep.subr.mxu0 0.0
        %855 = vmatpush2.msra.mxu0 0.0
        %856 = vmatprep.subr.mxu0 0.0
        %857 = vmatpush2.msra.mxu0 0.0
        %858 = vmatprep.subr.mxu0 0.0
        %859 = vmatpush2.msra.mxu0 0.0
        %860 = vmatprep.subr.mxu0 0.0
        %861 = vmatpush2.msra.mxu0 0.0
        %862 = vmatprep.subr.mxu0 0.0
        %863 = vmatpush2.msra.mxu0 0.0
        %864 = vmatprep.subr.mxu0 0.0
        %865 = vmatpush2.msra.mxu0 0.0
        %866 = vmatprep.subr.mxu0 0.0
        %867 = vmatpush2.msra.mxu0 0.0
        %868 = vmatprep.subr.mxu0 0.0
        %869 = vmatpush2.msra.mxu0 0.0
        %870 = vmatprep.subr.mxu0 0.0
        %871 = vmatpush2.msra.mxu0 0.0
        %872 = vmatprep.subr.mxu0 0.0
        %873 = vmatpush2.msra.mxu0 0.0
        %874 = vmatprep.subr.mxu0 0.0
        %875 = vmatpush2.msra.mxu0 0.0
        %876 = vmatprep.subr.mxu0 0.0
        %877 = vmatpush2.msra.mxu0 0.0
        %878 = vmatprep.subr.mxu0 0.0
        %879 = vmatpush2.msra.mxu0 0.0
        %880 = vmatprep.subr.mxu0 0.0
        %881 = vmatpush2.msra.mxu0 0.0
        %882 = vmatprep.subr.mxu0 0.0
        %883 = vmatpush2.msra.mxu0 0.0
        %884 = vmatprep.subr.mxu0 0.0
        %885 = vmatpush2.msra.mxu0 0.0
        %886 = vmatprep.mubr.f32.mxu0 0.0
        %887 = vmatmul.mubr.f32.gmra.mxu0 %v775
        %v888 = vpop.f32.mrf.mxu0
        %v889 = vadd.f32 %v696, %v888
        %v890 = vpop.f32.mrf.mxu0
        %v891 = vadd.f32 %v696, %v890
        %892 = vmatprep.mubr.f32.mxu0 0.0
        %893 = vmatmul.mubr.f32.gmra.mxu0 %v778
        %v894 = vpop.f32.mrf.mxu0
        %v895 = vadd.f32 %v701, %v894
        %v896 = vpop.f32.mrf.mxu0
        %v897 = vadd.f32 %v701, %v896
        %898 = vmatprep.mubr.f32.mxu0 0.0
        %899 = vmatmul.mubr.f32.gmra.mxu0 %v781
        %v900 = vpop.f32.mrf.mxu0
        %v901 = vadd.f32 %v706, %v900
        %v902 = vpop.f32.mrf.mxu0
        %v903 = vadd.f32 %v706, %v902
        %904 = vmatprep.mubr.f32.mxu0 0.0
        %905 = vmatmul.mubr.f32.gmra.mxu0 %v784
        %v906 = vpop.f32.mrf.mxu0
        %v907 = vadd.f32 %v711, %v906
        %v908 = vpop.f32.mrf.mxu0
        %v909 = vadd.f32 %v711, %v908
        %910 = vmatprep.mubr.f32.mxu0 0.0
        %911 = vmatmul.mubr.f32.gmra.mxu0 %v787
        %v912 = vpop.f32.mrf.mxu0
        %v913 = vadd.f32 %v716, %v912
        %v914 = vpop.f32.mrf.mxu0
        %v915 = vadd.f32 %v716, %v914
        %916 = vmatprep.mubr.f32.mxu0 0.0
        %917 = vmatmul.mubr.f32.gmra.mxu0 %v790
        %v918 = vpop.f32.mrf.mxu0
        %v919 = vadd.f32 %v721, %v918
        %v920 = vpop.f32.mrf.mxu0
        %v921 = vadd.f32 %v721, %v920
        %922 = vmatprep.mubr.f32.mxu0 0.0
        %923 = vmatmul.mubr.f32.gmra.mxu0 %v793
        %v924 = vpop.f32.mrf.mxu0
        %v925 = vadd.f32 %v726, %v924
        %v926 = vpop.f32.mrf.mxu0
        %v927 = vadd.f32 %v726, %v926
        %928 = vmatprep.mubr.f32.mxu0 0.0
        %929 = vmatmul.mubr.f32.gmra.mxu0 %v796
        %v930 = vpop.f32.mrf.mxu0
        %v931 = vadd.f32 %v731, %v930
        %v932 = vpop.f32.mrf.mxu0
        %v933 = vadd.f32 %v731, %v932
        %934 = vmatprep.mubr.f32.mxu0 0.0
        %935 = vmatmul.mubr.f32.gmra.mxu0 %v799
        %v936 = vpop.f32.mrf.mxu0
        %v937 = vadd.f32 %v736, %v936
        %v938 = vpop.f32.mrf.mxu0
        %v939 = vadd.f32 %v736, %v938
        %940 = vmatprep.mubr.f32.mxu0 0.0
        %941 = vmatmul.mubr.f32.gmra.mxu0 %v802
        %v942 = vpop.f32.mrf.mxu0
        %v943 = vadd.f32 %v741, %v942
        %v944 = vpop.f32.mrf.mxu0
        %v945 = vadd.f32 %v741, %v944
        %946 = vmatprep.mubr.f32.mxu0 0.0
        %947 = vmatmul.mubr.f32.gmra.mxu0 %v805
        %v948 = vpop.f32.mrf.mxu0
        %v949 = vadd.f32 %v746, %v948
        %v950 = vpop.f32.mrf.mxu0
        %v951 = vadd.f32 %v746, %v950
        %952 = vmatprep.mubr.f32.mxu0 0.0
        %953 = vmatmul.mubr.f32.gmra.mxu0 %v808
        %v954 = vpop.f32.mrf.mxu0
        %v955 = vadd.f32 %v751, %v954
        %v956 = vpop.f32.mrf.mxu0
        %v957 = vadd.f32 %v751, %v956
        %958 = vmatprep.mubr.f32.mxu0 0.0
        %959 = vmatmul.mubr.f32.gmra.mxu0 %v811
        %v960 = vpop.f32.mrf.mxu0
        %v961 = vadd.f32 %v756, %v960
        %v962 = vpop.f32.mrf.mxu0
        %v963 = vadd.f32 %v756, %v962
        %964 = vmatprep.mubr.f32.mxu0 0.0
        %965 = vmatmul.mubr.f32.gmra.mxu0 %v814
        %v966 = vpop.f32.mrf.mxu0
        %v967 = vadd.f32 %v761, %v966
        %v968 = vpop.f32.mrf.mxu0
        %v969 = vadd.f32 %v761, %v968
        %970 = vmatprep.mubr.f32.mxu0 0.0
        %971 = vmatmul.mubr.f32.gmra.mxu0 %v817
        %v972 = vpop.f32.mrf.mxu0
        %v973 = vadd.f32 %v766, %v972
        %v974 = vpop.f32.mrf.mxu0
        %v975 = vadd.f32 %v766, %v974
        %976 = vmatprep.mubr.f32.mxu0 0.0
        %977 = vmatmul.mubr.f32.gmra.mxu0 %v820
        %v978 = vpop.f32.mrf.mxu0
        %v979 = vadd.f32 %v771, %v978
        %v980 = vpop.f32.mrf.mxu0
        %v981 = vadd.f32 %v771, %v980
        %982 = vdwg.mxu0
        %v983 = vmax.f32 %v889, 0.0
        %v984 = vmax.f32 %v891, 0.0
        %v985 = vmax.f32 %v895, 0.0
        %v986 = vmax.f32 %v897, 0.0
        %v987 = vmax.f32 %v901, 0.0
        %v988 = vmax.f32 %v903, 0.0
        %v989 = vmax.f32 %v907, 0.0
        %v990 = vmax.f32 %v909, 0.0
        %v991 = vmax.f32 %v913, 0.0
        %v992 = vmax.f32 %v915, 0.0
        %v993 = vmax.f32 %v919, 0.0
        %v994 = vmax.f32 %v921, 0.0
        %v995 = vmax.f32 %v925, 0.0
        %v996 = vmax.f32 %v927, 0.0
        %v997 = vmax.f32 %v931, 0.0
        %v998 = vmax.f32 %v933, 0.0
        %v999 = vmax.f32 %v937, 0.0
        %v1000 = vmax.f32 %v939, 0.0
        %v1001 = vmax.f32 %v943, 0.0
        %v1002 = vmax.f32 %v945, 0.0
        %v1003 = vmax.f32 %v949, 0.0
        %v1004 = vmax.f32 %v951, 0.0
        %v1005 = vmax.f32 %v955, 0.0
        %v1006 = vmax.f32 %v957, 0.0
        %v1007 = vmax.f32 %v961, 0.0
        %v1008 = vmax.f32 %v963, 0.0
        %v1009 = vmax.f32 %v967, 0.0
        %v1010 = vmax.f32 %v969, 0.0
        %v1011 = vmax.f32 %v973, 0.0
        %v1012 = vmax.f32 %v975, 0.0
        %v1013 = vmax.f32 %v979, 0.0
        %v1014 = vmax.f32 %v981, 0.0
        %v1015 = vld [vmem:[#allocation2] sm:$0xff]
        %v1016 = vld [vmem:[#allocation2 + $0x8] sm:$0xff]
        %v1017 = vld [vmem:[#allocation2 + $0x10] sm:$0xff]
        %v1018 = vld [vmem:[#allocation2 + $0x18] sm:$0xff]
        %v1019 = vld [vmem:[#allocation2 + $0x20] sm:$0xff]
        %v1020 = vld [vmem:[#allocation2 + $0x28] sm:$0xff]
        %v1021 = vld [vmem:[#allocation2 + $0x30] sm:$0xff]
        %v1022 = vld [vmem:[#allocation2 + $0x38] sm:$0xff]
        %v1023 = vld [vmem:[#allocation2 + $0x40] sm:$0xff]
        %v1024 = vld [vmem:[#allocation2 + $0x48] sm:$0xff]
        %v1025 = vld [vmem:[#allocation2 + $0x50] sm:$0xff]
        %v1026 = vld [vmem:[#allocation2 + $0x58] sm:$0xff]
        %v1027 = vld [vmem:[#allocation2 + $0x60] sm:$0xff]
        %v1028 = vld [vmem:[#allocation2 + $0x68] sm:$0xff]
        %v1029 = vld [vmem:[#allocation2 + $0x70] sm:$0xff]
        %v1030 = vld [vmem:[#allocation2 + $0x78] sm:$0xff]
        %v1031 = vld [vmem:[%s6] sm:$0xff]
        %v1032 = vld [vmem:[%s6 + $0x8] sm:$0xff]
        %v1033 = vld [vmem:[%s6 + $0x10] sm:$0xff]
        %v1034 = vld [vmem:[%s6 + $0x18] sm:$0xff]
        %v1035 = vld [vmem:[%s6 + $0x20] sm:$0xff]
        %v1036 = vld [vmem:[%s6 + $0x28] sm:$0xff]
        %v1037 = vld [vmem:[%s6 + $0x30] sm:$0xff]
        %v1038 = vld [vmem:[%s6 + $0x38] sm:$0xff]
        %v1039 = vld [vmem:[%s6 + $0x40] sm:$0xff]
        %v1040 = vld [vmem:[%s6 + $0x48] sm:$0xff]
        %v1041 = vld [vmem:[%s6 + $0x50] sm:$0xff]
        %v1042 = vld [vmem:[%s6 + $0x58] sm:$0xff]
        %v1043 = vld [vmem:[%s6 + $0x60] sm:$0xff]
        %v1044 = vld [vmem:[%s6 + $0x68] sm:$0xff]
        %v1045 = vld [vmem:[%s6 + $0x70] sm:$0xff]
        %v1046 = vld [vmem:[%s6 + $0x78] sm:$0xff]
        %1048 = vset.pattern.permute.xlu0 0
        %1049 = vperm.xlu0 %1048, %v1031
        %v1050 = vpop.permute.xlu0 %1049
        %1053 = vset.pattern.permute.xlu0 0
        %1054 = vperm.xlu0 %1053, %v1032
        %v1055 = vpop.permute.xlu0 %1054
        %1058 = vset.pattern.permute.xlu0 0
        %1059 = vperm.xlu0 %1058, %v1033
        %v1060 = vpop.permute.xlu0 %1059
        %1063 = vset.pattern.permute.xlu0 0
        %1064 = vperm.xlu0 %1063, %v1034
        %v1065 = vpop.permute.xlu0 %1064
        %1068 = vset.pattern.permute.xlu0 0
        %1069 = vperm.xlu0 %1068, %v1035
        %v1070 = vpop.permute.xlu0 %1069
        %1073 = vset.pattern.permute.xlu0 0
        %1074 = vperm.xlu0 %1073, %v1036
        %v1075 = vpop.permute.xlu0 %1074
        %1078 = vset.pattern.permute.xlu0 0
        %1079 = vperm.xlu0 %1078, %v1037
        %v1080 = vpop.permute.xlu0 %1079
        %1083 = vset.pattern.permute.xlu0 0
        %1084 = vperm.xlu0 %1083, %v1038
        %v1085 = vpop.permute.xlu0 %1084
        %1088 = vset.pattern.permute.xlu0 0
        %1089 = vperm.xlu0 %1088, %v1039
        %v1090 = vpop.permute.xlu0 %1089
        %1093 = vset.pattern.permute.xlu0 0
        %1094 = vperm.xlu0 %1093, %v1040
        %v1095 = vpop.permute.xlu0 %1094
        %1098 = vset.pattern.permute.xlu0 0
        %1099 = vperm.xlu0 %1098, %v1041
        %v1100 = vpop.permute.xlu0 %1099
        %1103 = vset.pattern.permute.xlu0 0
        %1104 = vperm.xlu0 %1103, %v1042
        %v1105 = vpop.permute.xlu0 %1104
        %1108 = vset.pattern.permute.xlu0 0
        %1109 = vperm.xlu0 %1108, %v1043
        %v1110 = vpop.permute.xlu0 %1109
        %1113 = vset.pattern.permute.xlu0 0
        %1114 = vperm.xlu0 %1113, %v1044
        %v1115 = vpop.permute.xlu0 %1114
        %1118 = vset.pattern.permute.xlu0 0
        %1119 = vperm.xlu0 %1118, %v1045
        %v1120 = vpop.permute.xlu0 %1119
        %1123 = vset.pattern.permute.xlu0 0
        %1124 = vperm.xlu0 %1123, %v1046
        %v1125 = vpop.permute.xlu0 %1124
        %1127 = vmatprep.subr.mxu0 %v1014
        %1128 = vmatpush1.msra.mxu0 %v1013
        %1129 = vmatprep.subr.mxu0 %v1012
        %1130 = vmatpush1.msra.mxu0 %v1011
        %1131 = vmatprep.subr.mxu0 %v1010
        %1132 = vmatpush1.msra.mxu0 %v1009
        %1133 = vmatprep.subr.mxu0 %v1008
        %1134 = vmatpush1.msra.mxu0 %v1007
        %1135 = vmatprep.subr.mxu0 %v1006
        %1136 = vmatpush1.msra.mxu0 %v1005
        %1137 = vmatprep.subr.mxu0 %v1004
        %1138 = vmatpush1.msra.mxu0 %v1003
        %1139 = vmatprep.subr.mxu0 %v1002
        %1140 = vmatpush1.msra.mxu0 %v1001
        %1141 = vmatprep.subr.mxu0 %v1000
        %1142 = vmatpush1.msra.mxu0 %v999
        %1143 = vmatprep.subr.mxu0 %v998
        %1144 = vmatpush1.msra.mxu0 %v997
        %1145 = vmatprep.subr.mxu0 %v996
        %1146 = vmatpush1.msra.mxu0 %v995
        %1147 = vmatprep.subr.mxu0 %v994
        %1148 = vmatpush1.msra.mxu0 %v993
        %1149 = vmatprep.subr.mxu0 %v992
        %1150 = vmatpush1.msra.mxu0 %v991
        %1151 = vmatprep.subr.mxu0 %v990
        %1152 = vmatpush1.msra.mxu0 %v989
        %1153 = vmatprep.subr.mxu0 %v988
        %1154 = vmatpush1.msra.mxu0 %v987
        %1155 = vmatprep.subr.mxu0 %v986
        %1156 = vmatpush1.msra.mxu0 %v985
        %1157 = vmatprep.subr.mxu0 %v984
        %1158 = vmatpush1.msra.mxu0 %v983
        %1159 = vmatprep.subr.mxu0 0.0
        %1160 = vmatpush2.msra.mxu0 0.0
        %1161 = vmatprep.subr.mxu0 0.0
        %1162 = vmatpush2.msra.mxu0 0.0
        %1163 = vmatprep.subr.mxu0 0.0
        %1164 = vmatpush2.msra.mxu0 0.0
        %1165 = vmatprep.subr.mxu0 0.0
        %1166 = vmatpush2.msra.mxu0 0.0
        %1167 = vmatprep.subr.mxu0 0.0
        %1168 = vmatpush2.msra.mxu0 0.0
        %1169 = vmatprep.subr.mxu0 0.0
        %1170 = vmatpush2.msra.mxu0 0.0
        %1171 = vmatprep.subr.mxu0 0.0
        %1172 = vmatpush2.msra.mxu0 0.0
        %1173 = vmatprep.subr.mxu0 0.0
        %1174 = vmatpush2.msra.mxu0 0.0
        %1175 = vmatprep.subr.mxu0 0.0
        %1176 = vmatpush2.msra.mxu0 0.0
        %1177 = vmatprep.subr.mxu0 0.0
        %1178 = vmatpush2.msra.mxu0 0.0
        %1179 = vmatprep.subr.mxu0 0.0
        %1180 = vmatpush2.msra.mxu0 0.0
        %1181 = vmatprep.subr.mxu0 0.0
        %1182 = vmatpush2.msra.mxu0 0.0
        %1183 = vmatprep.subr.mxu0 0.0
        %1184 = vmatpush2.msra.mxu0 0.0
        %1185 = vmatprep.subr.mxu0 0.0
        %1186 = vmatpush2.msra.mxu0 0.0
        %1187 = vmatprep.subr.mxu0 0.0
        %1188 = vmatpush2.msra.mxu0 0.0
        %1189 = vmatprep.subr.mxu0 0.0
        %1190 = vmatpush2.msra.mxu0 0.0
        %1191 = vmatprep.mubr.f32.mxu0 0.0
        %1192 = vmatmul.mubr.f32.gmra.mxu0 %v1015
        %v1193 = vpop.f32.mrf.mxu0
        %v1194 = vadd.f32 %v1050, %v1193
        %v1195 = vpop.f32.mrf.mxu0
        %v1196 = vadd.f32 %v1050, %v1195
        %1197 = vmatprep.mubr.f32.mxu0 0.0
        %1198 = vmatmul.mubr.f32.gmra.mxu0 %v1016
        %v1199 = vpop.f32.mrf.mxu0
        %v1200 = vadd.f32 %v1055, %v1199
        %v1201 = vpop.f32.mrf.mxu0
        %v1202 = vadd.f32 %v1055, %v1201
        %1203 = vmatprep.mubr.f32.mxu0 0.0
        %1204 = vmatmul.mubr.f32.gmra.mxu0 %v1017
        %v1205 = vpop.f32.mrf.mxu0
        %v1206 = vadd.f32 %v1060, %v1205
        %v1207 = vpop.f32.mrf.mxu0
        %v1208 = vadd.f32 %v1060, %v1207
        %1209 = vmatprep.mubr.f32.mxu0 0.0
        %1210 = vmatmul.mubr.f32.gmra.mxu0 %v1018
        %v1211 = vpop.f32.mrf.mxu0
        %v1212 = vadd.f32 %v1065, %v1211
        %v1213 = vpop.f32.mrf.mxu0
        %v1214 = vadd.f32 %v1065, %v1213
        %1215 = vmatprep.mubr.f32.mxu0 0.0
        %1216 = vmatmul.mubr.f32.gmra.mxu0 %v1019
        %v1217 = vpop.f32.mrf.mxu0
        %v1218 = vadd.f32 %v1070, %v1217
        %v1219 = vpop.f32.mrf.mxu0
        %v1220 = vadd.f32 %v1070, %v1219
        %1221 = vmatprep.mubr.f32.mxu0 0.0
        %1222 = vmatmul.mubr.f32.gmra.mxu0 %v1020
        %v1223 = vpop.f32.mrf.mxu0
        %v1224 = vadd.f32 %v1075, %v1223
        %v1225 = vpop.f32.mrf.mxu0
        %v1226 = vadd.f32 %v1075, %v1225
        %1227 = vmatprep.mubr.f32.mxu0 0.0
        %1228 = vmatmul.mubr.f32.gmra.mxu0 %v1021
        %v1229 = vpop.f32.mrf.mxu0
        %v1230 = vadd.f32 %v1080, %v1229
        %v1231 = vpop.f32.mrf.mxu0
        %v1232 = vadd.f32 %v1080, %v1231
        %1233 = vmatprep.mubr.f32.mxu0 0.0
        %1234 = vmatmul.mubr.f32.gmra.mxu0 %v1022
        %v1235 = vpop.f32.mrf.mxu0
        %v1236 = vadd.f32 %v1085, %v1235
        %v1237 = vpop.f32.mrf.mxu0
        %v1238 = vadd.f32 %v1085, %v1237
        %1239 = vmatprep.mubr.f32.mxu0 0.0
        %1240 = vmatmul.mubr.f32.gmra.mxu0 %v1023
        %v1241 = vpop.f32.mrf.mxu0
        %v1242 = vadd.f32 %v1090, %v1241
        %v1243 = vpop.f32.mrf.mxu0
        %v1244 = vadd.f32 %v1090, %v1243
        %1245 = vmatprep.mubr.f32.mxu0 0.0
        %1246 = vmatmul.mubr.f32.gmra.mxu0 %v1024
        %v1247 = vpop.f32.mrf.mxu0
        %v1248 = vadd.f32 %v1095, %v1247
        %v1249 = vpop.f32.mrf.mxu0
        %v1250 = vadd.f32 %v1095, %v1249
        %1251 = vmatprep.mubr.f32.mxu0 0.0
        %1252 = vmatmul.mubr.f32.gmra.mxu0 %v1025
        %v1253 = vpop.f32.mrf.mxu0
        %v1254 = vadd.f32 %v1100, %v1253
        %v1255 = vpop.f32.mrf.mxu0
        %v1256 = vadd.f32 %v1100, %v1255
        %1257 = vmatprep.mubr.f32.mxu0 0.0
        %1258 = vmatmul.mubr.f32.gmra.mxu0 %v1026
        %v1259 = vpop.f32.mrf.mxu0
        %v1260 = vadd.f32 %v1105, %v1259
        %v1261 = vpop.f32.mrf.mxu0
        %v1262 = vadd.f32 %v1105, %v1261
        %1263 = vmatprep.mubr.f32.mxu0 0.0
        %1264 = vmatmul.mubr.f32.gmra.mxu0 %v1027
        %v1265 = vpop.f32.mrf.mxu0
        %v1266 = vadd.f32 %v1110, %v1265
        %v1267 = vpop.f32.mrf.mxu0
        %v1268 = vadd.f32 %v1110, %v1267
        %1269 = vmatprep.mubr.f32.mxu0 0.0
        %1270 = vmatmul.mubr.f32.gmra.mxu0 %v1028
        %v1271 = vpop.f32.mrf.mxu0
        %v1272 = vadd.f32 %v1115, %v1271
        %v1273 = vpop.f32.mrf.mxu0
        %v1274 = vadd.f32 %v1115, %v1273
        %1275 = vmatprep.mubr.f32.mxu0 0.0
        %1276 = vmatmul.mubr.f32.gmra.mxu0 %v1029
        %v1277 = vpop.f32.mrf.mxu0
        %v1278 = vadd.f32 %v1120, %v1277
        %v1279 = vpop.f32.mrf.mxu0
        %v1280 = vadd.f32 %v1120, %v1279
        %1281 = vmatprep.mubr.f32.mxu0 0.0
        %1282 = vmatmul.mubr.f32.gmra.mxu0 %v1030
        %v1283 = vpop.f32.mrf.mxu0
        %v1284 = vadd.f32 %v1125, %v1283
        %v1285 = vpop.f32.mrf.mxu0
        %v1286 = vadd.f32 %v1125, %v1285
        %1287 = vdwg.mxu0
        %1288 = vst [vmem:[%s331] sm:$0xff] %v1194
        %1289 = vst [vmem:[%s331 + $0x8] sm:$0xff] %v1196
        %1290 = vst [vmem:[%s331 + $0x10] sm:$0xff] %v1200
        %1291 = vst [vmem:[%s331 + $0x18] sm:$0xff] %v1202
        %1292 = vst [vmem:[%s331 + $0x20] sm:$0xff] %v1206
        %1293 = vst [vmem:[%s331 + $0x28] sm:$0xff] %v1208
        %1294 = vst [vmem:[%s331 + $0x30] sm:$0xff] %v1212
        %1295 = vst [vmem:[%s331 + $0x38] sm:$0xff] %v1214
        %1296 = vst [vmem:[%s331 + $0x40] sm:$0xff] %v1218
        %1297 = vst [vmem:[%s331 + $0x48] sm:$0xff] %v1220
        %1298 = vst [vmem:[%s331 + $0x50] sm:$0xff] %v1224
        %1299 = vst [vmem:[%s331 + $0x58] sm:$0xff] %v1226
        %1300 = vst [vmem:[%s331 + $0x60] sm:$0xff] %v1230
        %1301 = vst [vmem:[%s331 + $0x68] sm:$0xff] %v1232
        %1302 = vst [vmem:[%s331 + $0x70] sm:$0xff] %v1236
        %1303 = vst [vmem:[%s331 + $0x78] sm:$0xff] %v1238
        %1304 = vst [vmem:[%s331 + $0x80] sm:$0xff] %v1242
        %1305 = vst [vmem:[%s331 + $0x88] sm:$0xff] %v1244
        %1306 = vst [vmem:[%s331 + $0x90] sm:$0xff] %v1248
        %1307 = vst [vmem:[%s331 + $0x98] sm:$0xff] %v1250
        %1308 = vst [vmem:[%s331 + $0xa0] sm:$0xff] %v1254
        %1309 = vst [vmem:[%s331 + $0xa8] sm:$0xff] %v1256
        %1310 = vst [vmem:[%s331 + $0xb0] sm:$0xff] %v1260
        %1311 = vst [vmem:[%s331 + $0xb8] sm:$0xff] %v1262
        %1312 = vst [vmem:[%s331 + $0xc0] sm:$0xff] %v1266
        %1313 = vst [vmem:[%s331 + $0xc8] sm:$0xff] %v1268
        %1314 = vst [vmem:[%s331 + $0xd0] sm:$0xff] %v1272
        %1315 = vst [vmem:[%s331 + $0xd8] sm:$0xff] %v1274
        %1316 = vst [vmem:[%s331 + $0xe0] sm:$0xff] %v1278
        %1317 = vst [vmem:[%s331 + $0xe8] sm:$0xff] %v1280
        %1318 = vst [vmem:[%s331 + $0xf0] sm:$0xff] %v1284
        %1319 = vst [vmem:[%s331 + $0xf8] sm:$0xff] %v1286
        %v1320 = vld [vmem:[#allocation2 + $0x80] sm:$0xff]
        %v1321 = vld [vmem:[#allocation2 + $0x88] sm:$0xff]
        %v1322 = vld [vmem:[#allocation2 + $0x90] sm:$0xff]
        %v1323 = vld [vmem:[#allocation2 + $0x98] sm:$0xff]
        %v1324 = vld [vmem:[#allocation2 + $0xa0] sm:$0xff]
        %v1325 = vld [vmem:[#allocation2 + $0xa8] sm:$0xff]
        %v1326 = vld [vmem:[#allocation2 + $0xb0] sm:$0xff]
        %v1327 = vld [vmem:[#allocation2 + $0xb8] sm:$0xff]
        %v1328 = vld [vmem:[#allocation2 + $0xc0] sm:$0xff]
        %v1329 = vld [vmem:[#allocation2 + $0xc8] sm:$0xff]
        %v1330 = vld [vmem:[#allocation2 + $0xd0] sm:$0xff]
        %v1331 = vld [vmem:[#allocation2 + $0xd8] sm:$0xff]
        %v1332 = vld [vmem:[#allocation2 + $0xe0] sm:$0xff]
        %v1333 = vld [vmem:[#allocation2 + $0xe8] sm:$0xff]
        %v1334 = vld [vmem:[#allocation2 + $0xf0] sm:$0xff]
        %v1335 = vld [vmem:[#allocation2 + $0xf8] sm:$0xff]
        %v1336 = vld [vmem:[%s6 + $0x80] sm:$0xff]
        %v1337 = vld [vmem:[%s6 + $0x88] sm:$0xff]
        %v1338 = vld [vmem:[%s6 + $0x90] sm:$0xff]
        %v1339 = vld [vmem:[%s6 + $0x98] sm:$0xff]
        %v1340 = vld [vmem:[%s6 + $0xa0] sm:$0xff]
        %v1341 = vld [vmem:[%s6 + $0xa8] sm:$0xff]
        %v1342 = vld [vmem:[%s6 + $0xb0] sm:$0xff]
        %v1343 = vld [vmem:[%s6 + $0xb8] sm:$0xff]
        %v1344 = vld [vmem:[%s6 + $0xc0] sm:$0xff]
        %v1345 = vld [vmem:[%s6 + $0xc8] sm:$0xff]
        %v1346 = vld [vmem:[%s6 + $0xd0] sm:$0xff]
        %v1347 = vld [vmem:[%s6 + $0xd8] sm:$0xff]
        %v1348 = vld [vmem:[%s6 + $0xe0] sm:$0xff]
        %v1349 = vld [vmem:[%s6 + $0xe8] sm:$0xff]
        %v1350 = vld [vmem:[%s6 + $0xf0] sm:$0xff]
        %v1351 = vld [vmem:[%s6 + $0xf8] sm:$0xff]
        %1353 = vset.pattern.permute.xlu0 0
        %1354 = vperm.xlu0 %1353, %v1336
        %v1355 = vpop.permute.xlu0 %1354
        %1358 = vset.pattern.permute.xlu0 0
        %1359 = vperm.xlu0 %1358, %v1337
        %v1360 = vpop.permute.xlu0 %1359
        %1363 = vset.pattern.permute.xlu0 0
        %1364 = vperm.xlu0 %1363, %v1338
        %v1365 = vpop.permute.xlu0 %1364
        %1368 = vset.pattern.permute.xlu0 0
        %1369 = vperm.xlu0 %1368, %v1339
        %v1370 = vpop.permute.xlu0 %1369
        %1373 = vset.pattern.permute.xlu0 0
        %1374 = vperm.xlu0 %1373, %v1340
        %v1375 = vpop.permute.xlu0 %1374
        %1378 = vset.pattern.permute.xlu0 0
        %1379 = vperm.xlu0 %1378, %v1341
        %v1380 = vpop.permute.xlu0 %1379
        %1383 = vset.pattern.permute.xlu0 0
        %1384 = vperm.xlu0 %1383, %v1342
        %v1385 = vpop.permute.xlu0 %1384
        %1388 = vset.pattern.permute.xlu0 0
        %1389 = vperm.xlu0 %1388, %v1343
        %v1390 = vpop.permute.xlu0 %1389
        %1393 = vset.pattern.permute.xlu0 0
        %1394 = vperm.xlu0 %1393, %v1344
        %v1395 = vpop.permute.xlu0 %1394
        %1398 = vset.pattern.permute.xlu0 0
        %1399 = vperm.xlu0 %1398, %v1345
        %v1400 = vpop.permute.xlu0 %1399
        %1403 = vset.pattern.permute.xlu0 0
        %1404 = vperm.xlu0 %1403, %v1346
        %v1405 = vpop.permute.xlu0 %1404
        %1408 = vset.pattern.permute.xlu0 0
        %1409 = vperm.xlu0 %1408, %v1347
        %v1410 = vpop.permute.xlu0 %1409
        %1413 = vset.pattern.permute.xlu0 0
        %1414 = vperm.xlu0 %1413, %v1348
        %v1415 = vpop.permute.xlu0 %1414
        %1418 = vset.pattern.permute.xlu0 0
        %1419 = vperm.xlu0 %1418, %v1349
        %v1420 = vpop.permute.xlu0 %1419
        %1423 = vset.pattern.permute.xlu0 0
        %1424 = vperm.xlu0 %1423, %v1350
        %v1425 = vpop.permute.xlu0 %1424
        %1428 = vset.pattern.permute.xlu0 0
        %1429 = vperm.xlu0 %1428, %v1351
        %v1430 = vpop.permute.xlu0 %1429
        %1432 = vmatprep.subr.mxu0 %v1014
        %1433 = vmatpush1.msra.mxu0 %v1013
        %1434 = vmatprep.subr.mxu0 %v1012
        %1435 = vmatpush1.msra.mxu0 %v1011
        %1436 = vmatprep.subr.mxu0 %v1010
        %1437 = vmatpush1.msra.mxu0 %v1009
        %1438 = vmatprep.subr.mxu0 %v1008
        %1439 = vmatpush1.msra.mxu0 %v1007
        %1440 = vmatprep.subr.mxu0 %v1006
        %1441 = vmatpush1.msra.mxu0 %v1005
        %1442 = vmatprep.subr.mxu0 %v1004
        %1443 = vmatpush1.msra.mxu0 %v1003
        %1444 = vmatprep.subr.mxu0 %v1002
        %1445 = vmatpush1.msra.mxu0 %v1001
        %1446 = vmatprep.subr.mxu0 %v1000
        %1447 = vmatpush1.msra.mxu0 %v999
        %1448 = vmatprep.subr.mxu0 %v998
        %1449 = vmatpush1.msra.mxu0 %v997
        %1450 = vmatprep.subr.mxu0 %v996
        %1451 = vmatpush1.msra.mxu0 %v995
        %1452 = vmatprep.subr.mxu0 %v994
        %1453 = vmatpush1.msra.mxu0 %v993
        %1454 = vmatprep.subr.mxu0 %v992
        %1455 = vmatpush1.msra.mxu0 %v991
        %1456 = vmatprep.subr.mxu0 %v990
        %1457 = vmatpush1.msra.mxu0 %v989
        %1458 = vmatprep.subr.mxu0 %v988
        %1459 = vmatpush1.msra.mxu0 %v987
        %1460 = vmatprep.subr.mxu0 %v986
        %1461 = vmatpush1.msra.mxu0 %v985
        %1462 = vmatprep.subr.mxu0 %v984
        %1463 = vmatpush1.msra.mxu0 %v983
        %1464 = vmatprep.subr.mxu0 0.0
        %1465 = vmatpush2.msra.mxu0 0.0
        %1466 = vmatprep.subr.mxu0 0.0
        %1467 = vmatpush2.msra.mxu0 0.0
        %1468 = vmatprep.subr.mxu0 0.0
        %1469 = vmatpush2.msra.mxu0 0.0
        %1470 = vmatprep.subr.mxu0 0.0
        %1471 = vmatpush2.msra.mxu0 0.0
        %1472 = vmatprep.subr.mxu0 0.0
        %1473 = vmatpush2.msra.mxu0 0.0
        %1474 = vmatprep.subr.mxu0 0.0
        %1475 = vmatpush2.msra.mxu0 0.0
        %1476 = vmatprep.subr.mxu0 0.0
        %1477 = vmatpush2.msra.mxu0 0.0
        %1478 = vmatprep.subr.mxu0 0.0
        %1479 = vmatpush2.msra.mxu0 0.0
        %1480 = vmatprep.subr.mxu0 0.0
        %1481 = vmatpush2.msra.mxu0 0.0
        %1482 = vmatprep.subr.mxu0 0.0
        %1483 = vmatpush2.msra.mxu0 0.0
        %1484 = vmatprep.subr.mxu0 0.0
        %1485 = vmatpush2.msra.mxu0 0.0
        %1486 = vmatprep.subr.mxu0 0.0
        %1487 = vmatpush2.msra.mxu0 0.0
        %1488 = vmatprep.subr.mxu0 0.0
        %1489 = vmatpush2.msra.mxu0 0.0
        %1490 = vmatprep.subr.mxu0 0.0
        %1491 = vmatpush2.msra.mxu0 0.0
        %1492 = vmatprep.subr.mxu0 0.0
        %1493 = vmatpush2.msra.mxu0 0.0
        %1494 = vmatprep.subr.mxu0 0.0
        %1495 = vmatpush2.msra.mxu0 0.0
        %1496 = vmatprep.mubr.f32.mxu0 0.0
        %1497 = vmatmul.mubr.f32.gmra.mxu0 %v1320
        %v1498 = vpop.f32.mrf.mxu0
        %v1499 = vadd.f32 %v1355, %v1498
        %v1500 = vpop.f32.mrf.mxu0
        %v1501 = vadd.f32 %v1355, %v1500
        %1502 = vmatprep.mubr.f32.mxu0 0.0
        %1503 = vmatmul.mubr.f32.gmra.mxu0 %v1321
        %v1504 = vpop.f32.mrf.mxu0
        %v1505 = vadd.f32 %v1360, %v1504
        %v1506 = vpop.f32.mrf.mxu0
        %v1507 = vadd.f32 %v1360, %v1506
        %1508 = vmatprep.mubr.f32.mxu0 0.0
        %1509 = vmatmul.mubr.f32.gmra.mxu0 %v1322
        %v1510 = vpop.f32.mrf.mxu0
        %v1511 = vadd.f32 %v1365, %v1510
        %v1512 = vpop.f32.mrf.mxu0
        %v1513 = vadd.f32 %v1365, %v1512
        %1514 = vmatprep.mubr.f32.mxu0 0.0
        %1515 = vmatmul.mubr.f32.gmra.mxu0 %v1323
        %v1516 = vpop.f32.mrf.mxu0
        %v1517 = vadd.f32 %v1370, %v1516
        %v1518 = vpop.f32.mrf.mxu0
        %v1519 = vadd.f32 %v1370, %v1518
        %1520 = vmatprep.mubr.f32.mxu0 0.0
        %1521 = vmatmul.mubr.f32.gmra.mxu0 %v1324
        %v1522 = vpop.f32.mrf.mxu0
        %v1523 = vadd.f32 %v1375, %v1522
        %v1524 = vpop.f32.mrf.mxu0
        %v1525 = vadd.f32 %v1375, %v1524
        %1526 = vmatprep.mubr.f32.mxu0 0.0
        %1527 = vmatmul.mubr.f32.gmra.mxu0 %v1325
        %v1528 = vpop.f32.mrf.mxu0
        %v1529 = vadd.f32 %v1380, %v1528
        %v1530 = vpop.f32.mrf.mxu0
        %v1531 = vadd.f32 %v1380, %v1530
        %1532 = vmatprep.mubr.f32.mxu0 0.0
        %1533 = vmatmul.mubr.f32.gmra.mxu0 %v1326
        %v1534 = vpop.f32.mrf.mxu0
        %v1535 = vadd.f32 %v1385, %v1534
        %v1536 = vpop.f32.mrf.mxu0
        %v1537 = vadd.f32 %v1385, %v1536
        %1538 = vmatprep.mubr.f32.mxu0 0.0
        %1539 = vmatmul.mubr.f32.gmra.mxu0 %v1327
        %v1540 = vpop.f32.mrf.mxu0
        %v1541 = vadd.f32 %v1390, %v1540
        %v1542 = vpop.f32.mrf.mxu0
        %v1543 = vadd.f32 %v1390, %v1542
        %1544 = vmatprep.mubr.f32.mxu0 0.0
        %1545 = vmatmul.mubr.f32.gmra.mxu0 %v1328
        %v1546 = vpop.f32.mrf.mxu0
        %v1547 = vadd.f32 %v1395, %v1546
        %v1548 = vpop.f32.mrf.mxu0
        %v1549 = vadd.f32 %v1395, %v1548
        %1550 = vmatprep.mubr.f32.mxu0 0.0
        %1551 = vmatmul.mubr.f32.gmra.mxu0 %v1329
        %v1552 = vpop.f32.mrf.mxu0
        %v1553 = vadd.f32 %v1400, %v1552
        %v1554 = vpop.f32.mrf.mxu0
        %v1555 = vadd.f32 %v1400, %v1554
        %1556 = vmatprep.mubr.f32.mxu0 0.0
        %1557 = vmatmul.mubr.f32.gmra.mxu0 %v1330
        %v1558 = vpop.f32.mrf.mxu0
        %v1559 = vadd.f32 %v1405, %v1558
        %v1560 = vpop.f32.mrf.mxu0
        %v1561 = vadd.f32 %v1405, %v1560
        %1562 = vmatprep.mubr.f32.mxu0 0.0
        %1563 = vmatmul.mubr.f32.gmra.mxu0 %v1331
        %v1564 = vpop.f32.mrf.mxu0
        %v1565 = vadd.f32 %v1410, %v1564
        %v1566 = vpop.f32.mrf.mxu0
        %v1567 = vadd.f32 %v1410, %v1566
        %1568 = vmatprep.mubr.f32.mxu0 0.0
        %1569 = vmatmul.mubr.f32.gmra.mxu0 %v1332
        %v1570 = vpop.f32.mrf.mxu0
        %v1571 = vadd.f32 %v1415, %v1570
        %v1572 = vpop.f32.mrf.mxu0
        %v1573 = vadd.f32 %v1415, %v1572
        %1574 = vmatprep.mubr.f32.mxu0 0.0
        %1575 = vmatmul.mubr.f32.gmra.mxu0 %v1333
        %v1576 = vpop.f32.mrf.mxu0
        %v1577 = vadd.f32 %v1420, %v1576
        %v1578 = vpop.f32.mrf.mxu0
        %v1579 = vadd.f32 %v1420, %v1578
        %1580 = vmatprep.mubr.f32.mxu0 0.0
        %1581 = vmatmul.mubr.f32.gmra.mxu0 %v1334
        %v1582 = vpop.f32.mrf.mxu0
        %v1583 = vadd.f32 %v1425, %v1582
        %v1584 = vpop.f32.mrf.mxu0
        %v1585 = vadd.f32 %v1425, %v1584
        %1586 = vmatprep.mubr.f32.mxu0 0.0
        %1587 = vmatmul.mubr.f32.gmra.mxu0 %v1335
        %v1588 = vpop.f32.mrf.mxu0
        %v1589 = vadd.f32 %v1430, %v1588
        %v1590 = vpop.f32.mrf.mxu0
        %v1591 = vadd.f32 %v1430, %v1590
        %1592 = vdwg.mxu0
        %1593 = vst [vmem:[%s331 + $0x100] sm:$0xff] %v1499
        %1594 = vst [vmem:[%s331 + $0x108] sm:$0xff] %v1501
        %1595 = vst [vmem:[%s331 + $0x110] sm:$0xff] %v1505
        %1596 = vst [vmem:[%s331 + $0x118] sm:$0xff] %v1507
        %1597 = vst [vmem:[%s331 + $0x120] sm:$0xff] %v1511
        %1598 = vst [vmem:[%s331 + $0x128] sm:$0xff] %v1513
        %1599 = vst [vmem:[%s331 + $0x130] sm:$0xff] %v1517
        %1600 = vst [vmem:[%s331 + $0x138] sm:$0xff] %v1519
        %1601 = vst [vmem:[%s331 + $0x140] sm:$0xff] %v1523
        %1602 = vst [vmem:[%s331 + $0x148] sm:$0xff] %v1525
        %1603 = vst [vmem:[%s331 + $0x150] sm:$0xff] %v1529
        %1604 = vst [vmem:[%s331 + $0x158] sm:$0xff] %v1531
        %1605 = vst [vmem:[%s331 + $0x160] sm:$0xff] %v1535
        %1606 = vst [vmem:[%s331 + $0x168] sm:$0xff] %v1537
        %1607 = vst [vmem:[%s331 + $0x170] sm:$0xff] %v1541
        %1608 = vst [vmem:[%s331 + $0x178] sm:$0xff] %v1543
        %1609 = vst [vmem:[%s331 + $0x180] sm:$0xff] %v1547
        %1610 = vst [vmem:[%s331 + $0x188] sm:$0xff] %v1549
        %1611 = vst [vmem:[%s331 + $0x190] sm:$0xff] %v1553
        %1612 = vst [vmem:[%s331 + $0x198] sm:$0xff] %v1555
        %1613 = vst [vmem:[%s331 + $0x1a0] sm:$0xff] %v1559
        %1614 = vst [vmem:[%s331 + $0x1a8] sm:$0xff] %v1561
        %1615 = vst [vmem:[%s331 + $0x1b0] sm:$0xff] %v1565
        %1616 = vst [vmem:[%s331 + $0x1b8] sm:$0xff] %v1567
        %1617 = vst [vmem:[%s331 + $0x1c0] sm:$0xff] %v1571
        %1618 = vst [vmem:[%s331 + $0x1c8] sm:$0xff] %v1573
        %1619 = vst [vmem:[%s331 + $0x1d0] sm:$0xff] %v1577
        %1620 = vst [vmem:[%s331 + $0x1d8] sm:$0xff] %v1579
        %1621 = vst [vmem:[%s331 + $0x1e0] sm:$0xff] %v1583
        %1622 = vst [vmem:[%s331 + $0x1e8] sm:$0xff] %v1585
        %1623 = vst [vmem:[%s331 + $0x1f0] sm:$0xff] %v1589
        %1624 = vst [vmem:[%s331 + $0x1f8] sm:$0xff] %v1591
        %v1625 = vld [vmem:[#allocation2 + $0x100] sm:$0xff]
        %v1626 = vld [vmem:[#allocation2 + $0x108] sm:$0xff]
        %v1627 = vld [vmem:[#allocation2 + $0x110] sm:$0xff]
        %v1628 = vld [vmem:[#allocation2 + $0x118] sm:$0xff]
        %v1629 = vld [vmem:[#allocation2 + $0x120] sm:$0xff]
        %v1630 = vld [vmem:[#allocation2 + $0x128] sm:$0xff]
        %v1631 = vld [vmem:[#allocation2 + $0x130] sm:$0xff]
        %v1632 = vld [vmem:[#allocation2 + $0x138] sm:$0xff]
        %v1633 = vld [vmem:[#allocation2 + $0x140] sm:$0xff]
        %v1634 = vld [vmem:[#allocation2 + $0x148] sm:$0xff]
        %v1635 = vld [vmem:[#allocation2 + $0x150] sm:$0xff]
        %v1636 = vld [vmem:[#allocation2 + $0x158] sm:$0xff]
        %v1637 = vld [vmem:[#allocation2 + $0x160] sm:$0xff]
        %v1638 = vld [vmem:[#allocation2 + $0x168] sm:$0xff]
        %v1639 = vld [vmem:[#allocation2 + $0x170] sm:$0xff]
        %v1640 = vld [vmem:[#allocation2 + $0x178] sm:$0xff]
        %v1641 = vld [vmem:[%s6 + $0x100] sm:$0xff]
        %v1642 = vld [vmem:[%s6 + $0x108] sm:$0xff]
        %v1643 = vld [vmem:[%s6 + $0x110] sm:$0xff]
        %v1644 = vld [vmem:[%s6 + $0x118] sm:$0xff]
        %v1645 = vld [vmem:[%s6 + $0x120] sm:$0xff]
        %v1646 = vld [vmem:[%s6 + $0x128] sm:$0xff]
        %v1647 = vld [vmem:[%s6 + $0x130] sm:$0xff]
        %v1648 = vld [vmem:[%s6 + $0x138] sm:$0xff]
        %v1649 = vld [vmem:[%s6 + $0x140] sm:$0xff]
        %v1650 = vld [vmem:[%s6 + $0x148] sm:$0xff]
        %v1651 = vld [vmem:[%s6 + $0x150] sm:$0xff]
        %v1652 = vld [vmem:[%s6 + $0x158] sm:$0xff]
        %v1653 = vld [vmem:[%s6 + $0x160] sm:$0xff]
        %v1654 = vld [vmem:[%s6 + $0x168] sm:$0xff]
        %v1655 = vld [vmem:[%s6 + $0x170] sm:$0xff]
        %v1656 = vld [vmem:[%s6 + $0x178] sm:$0xff]
        %1658 = vset.pattern.permute.xlu0 0
        %1659 = vperm.xlu0 %1658, %v1641
        %v1660 = vpop.permute.xlu0 %1659
        %1663 = vset.pattern.permute.xlu0 0
        %1664 = vperm.xlu0 %1663, %v1642
        %v1665 = vpop.permute.xlu0 %1664
        %1668 = vset.pattern.permute.xlu0 0
        %1669 = vperm.xlu0 %1668, %v1643
        %v1670 = vpop.permute.xlu0 %1669
        %1673 = vset.pattern.permute.xlu0 0
        %1674 = vperm.xlu0 %1673, %v1644
        %v1675 = vpop.permute.xlu0 %1674
        %1678 = vset.pattern.permute.xlu0 0
        %1679 = vperm.xlu0 %1678, %v1645
        %v1680 = vpop.permute.xlu0 %1679
        %1683 = vset.pattern.permute.xlu0 0
        %1684 = vperm.xlu0 %1683, %v1646
        %v1685 = vpop.permute.xlu0 %1684
        %1688 = vset.pattern.permute.xlu0 0
        %1689 = vperm.xlu0 %1688, %v1647
        %v1690 = vpop.permute.xlu0 %1689
        %1693 = vset.pattern.permute.xlu0 0
        %1694 = vperm.xlu0 %1693, %v1648
        %v1695 = vpop.permute.xlu0 %1694
        %1698 = vset.pattern.permute.xlu0 0
        %1699 = vperm.xlu0 %1698, %v1649
        %v1700 = vpop.permute.xlu0 %1699
        %1703 = vset.pattern.permute.xlu0 0
        %1704 = vperm.xlu0 %1703, %v1650
        %v1705 = vpop.permute.xlu0 %1704
        %1708 = vset.pattern.permute.xlu0 0
        %1709 = vperm.xlu0 %1708, %v1651
        %v1710 = vpop.permute.xlu0 %1709
        %1713 = vset.pattern.permute.xlu0 0
        %1714 = vperm.xlu0 %1713, %v1652
        %v1715 = vpop.permute.xlu0 %1714
        %1718 = vset.pattern.permute.xlu0 0
        %1719 = vperm.xlu0 %1718, %v1653
        %v1720 = vpop.permute.xlu0 %1719
        %1723 = vset.pattern.permute.xlu0 0
        %1724 = vperm.xlu0 %1723, %v1654
        %v1725 = vpop.permute.xlu0 %1724
        %1728 = vset.pattern.permute.xlu0 0
        %1729 = vperm.xlu0 %1728, %v1655
        %v1730 = vpop.permute.xlu0 %1729
        %1733 = vset.pattern.permute.xlu0 0
        %1734 = vperm.xlu0 %1733, %v1656
        %v1735 = vpop.permute.xlu0 %1734
        %1737 = vmatprep.subr.mxu0 %v1014
        %1738 = vmatpush1.msra.mxu0 %v1013
        %1739 = vmatprep.subr.mxu0 %v1012
        %1740 = vmatpush1.msra.mxu0 %v1011
        %1741 = vmatprep.subr.mxu0 %v1010
        %1742 = vmatpush1.msra.mxu0 %v1009
        %1743 = vmatprep.subr.mxu0 %v1008
        %1744 = vmatpush1.msra.mxu0 %v1007
        %1745 = vmatprep.subr.mxu0 %v1006
        %1746 = vmatpush1.msra.mxu0 %v1005
        %1747 = vmatprep.subr.mxu0 %v1004
        %1748 = vmatpush1.msra.mxu0 %v1003
        %1749 = vmatprep.subr.mxu0 %v1002
        %1750 = vmatpush1.msra.mxu0 %v1001
        %1751 = vmatprep.subr.mxu0 %v1000
        %1752 = vmatpush1.msra.mxu0 %v999
        %1753 = vmatprep.subr.mxu0 %v998
        %1754 = vmatpush1.msra.mxu0 %v997
        %1755 = vmatprep.subr.mxu0 %v996
        %1756 = vmatpush1.msra.mxu0 %v995
        %1757 = vmatprep.subr.mxu0 %v994
        %1758 = vmatpush1.msra.mxu0 %v993
        %1759 = vmatprep.subr.mxu0 %v992
        %1760 = vmatpush1.msra.mxu0 %v991
        %1761 = vmatprep.subr.mxu0 %v990
        %1762 = vmatpush1.msra.mxu0 %v989
        %1763 = vmatprep.subr.mxu0 %v988
        %1764 = vmatpush1.msra.mxu0 %v987
        %1765 = vmatprep.subr.mxu0 %v986
        %1766 = vmatpush1.msra.mxu0 %v985
        %1767 = vmatprep.subr.mxu0 %v984
        %1768 = vmatpush1.msra.mxu0 %v983
        %1769 = vmatprep.subr.mxu0 0.0
        %1770 = vmatpush2.msra.mxu0 0.0
        %1771 = vmatprep.subr.mxu0 0.0
        %1772 = vmatpush2.msra.mxu0 0.0
        %1773 = vmatprep.subr.mxu0 0.0
        %1774 = vmatpush2.msra.mxu0 0.0
        %1775 = vmatprep.subr.mxu0 0.0
        %1776 = vmatpush2.msra.mxu0 0.0
        %1777 = vmatprep.subr.mxu0 0.0
        %1778 = vmatpush2.msra.mxu0 0.0
        %1779 = vmatprep.subr.mxu0 0.0
        %1780 = vmatpush2.msra.mxu0 0.0
        %1781 = vmatprep.subr.mxu0 0.0
        %1782 = vmatpush2.msra.mxu0 0.0
        %1783 = vmatprep.subr.mxu0 0.0
        %1784 = vmatpush2.msra.mxu0 0.0
        %1785 = vmatprep.subr.mxu0 0.0
        %1786 = vmatpush2.msra.mxu0 0.0
        %1787 = vmatprep.subr.mxu0 0.0
        %1788 = vmatpush2.msra.mxu0 0.0
        %1789 = vmatprep.subr.mxu0 0.0
        %1790 = vmatpush2.msra.mxu0 0.0
        %1791 = vmatprep.subr.mxu0 0.0
        %1792 = vmatpush2.msra.mxu0 0.0
        %1793 = vmatprep.subr.mxu0 0.0
        %1794 = vmatpush2.msra.mxu0 0.0
        %1795 = vmatprep.subr.mxu0 0.0
        %1796 = vmatpush2.msra.mxu0 0.0
        %1797 = vmatprep.subr.mxu0 0.0
        %1798 = vmatpush2.msra.mxu0 0.0
        %1799 = vmatprep.subr.mxu0 0.0
        %1800 = vmatpush2.msra.mxu0 0.0
        %1801 = vmatprep.mubr.f32.mxu0 0.0
        %1802 = vmatmul.mubr.f32.gmra.mxu0 %v1625
        %v1803 = vpop.f32.mrf.mxu0
        %v1804 = vadd.f32 %v1660, %v1803
        %v1805 = vpop.f32.mrf.mxu0
        %v1806 = vadd.f32 %v1660, %v1805
        %1807 = vmatprep.mubr.f32.mxu0 0.0
        %1808 = vmatmul.mubr.f32.gmra.mxu0 %v1626
        %v1809 = vpop.f32.mrf.mxu0
        %v1810 = vadd.f32 %v1665, %v1809
        %v1811 = vpop.f32.mrf.mxu0
        %v1812 = vadd.f32 %v1665, %v1811
        %1813 = vmatprep.mubr.f32.mxu0 0.0
        %1814 = vmatmul.mubr.f32.gmra.mxu0 %v1627
        %v1815 = vpop.f32.mrf.mxu0
        %v1816 = vadd.f32 %v1670, %v1815
        %v1817 = vpop.f32.mrf.mxu0
        %v1818 = vadd.f32 %v1670, %v1817
        %1819 = vmatprep.mubr.f32.mxu0 0.0
        %1820 = vmatmul.mubr.f32.gmra.mxu0 %v1628
        %v1821 = vpop.f32.mrf.mxu0
        %v1822 = vadd.f32 %v1675, %v1821
        %v1823 = vpop.f32.mrf.mxu0
        %v1824 = vadd.f32 %v1675, %v1823
        %1825 = vmatprep.mubr.f32.mxu0 0.0
        %1826 = vmatmul.mubr.f32.gmra.mxu0 %v1629
        %v1827 = vpop.f32.mrf.mxu0
        %v1828 = vadd.f32 %v1680, %v1827
        %v1829 = vpop.f32.mrf.mxu0
        %v1830 = vadd.f32 %v1680, %v1829
        %1831 = vmatprep.mubr.f32.mxu0 0.0
        %1832 = vmatmul.mubr.f32.gmra.mxu0 %v1630
        %v1833 = vpop.f32.mrf.mxu0
        %v1834 = vadd.f32 %v1685, %v1833
        %v1835 = vpop.f32.mrf.mxu0
        %v1836 = vadd.f32 %v1685, %v1835
        %1837 = vmatprep.mubr.f32.mxu0 0.0
        %1838 = vmatmul.mubr.f32.gmra.mxu0 %v1631
        %v1839 = vpop.f32.mrf.mxu0
        %v1840 = vadd.f32 %v1690, %v1839
        %v1841 = vpop.f32.mrf.mxu0
        %v1842 = vadd.f32 %v1690, %v1841
        %1843 = vmatprep.mubr.f32.mxu0 0.0
        %1844 = vmatmul.mubr.f32.gmra.mxu0 %v1632
        %v1845 = vpop.f32.mrf.mxu0
        %v1846 = vadd.f32 %v1695, %v1845
        %v1847 = vpop.f32.mrf.mxu0
        %v1848 = vadd.f32 %v1695, %v1847
        %1849 = vmatprep.mubr.f32.mxu0 0.0
        %1850 = vmatmul.mubr.f32.gmra.mxu0 %v1633
        %v1851 = vpop.f32.mrf.mxu0
        %v1852 = vadd.f32 %v1700, %v1851
        %v1853 = vpop.f32.mrf.mxu0
        %v1854 = vadd.f32 %v1700, %v1853
        %1855 = vmatprep.mubr.f32.mxu0 0.0
        %1856 = vmatmul.mubr.f32.gmra.mxu0 %v1634
        %v1857 = vpop.f32.mrf.mxu0
        %v1858 = vadd.f32 %v1705, %v1857
        %v1859 = vpop.f32.mrf.mxu0
        %v1860 = vadd.f32 %v1705, %v1859
        %1861 = vmatprep.mubr.f32.mxu0 0.0
        %1862 = vmatmul.mubr.f32.gmra.mxu0 %v1635
        %v1863 = vpop.f32.mrf.mxu0
        %v1864 = vadd.f32 %v1710, %v1863
        %v1865 = vpop.f32.mrf.mxu0
        %v1866 = vadd.f32 %v1710, %v1865
        %1867 = vmatprep.mubr.f32.mxu0 0.0
        %1868 = vmatmul.mubr.f32.gmra.mxu0 %v1636
        %v1869 = vpop.f32.mrf.mxu0
        %v1870 = vadd.f32 %v1715, %v1869
        %v1871 = vpop.f32.mrf.mxu0
        %v1872 = vadd.f32 %v1715, %v1871
        %1873 = vmatprep.mubr.f32.mxu0 0.0
        %1874 = vmatmul.mubr.f32.gmra.mxu0 %v1637
        %v1875 = vpop.f32.mrf.mxu0
        %v1876 = vadd.f32 %v1720, %v1875
        %v1877 = vpop.f32.mrf.mxu0
        %v1878 = vadd.f32 %v1720, %v1877
        %1879 = vmatprep.mubr.f32.mxu0 0.0
        %1880 = vmatmul.mubr.f32.gmra.mxu0 %v1638
        %v1881 = vpop.f32.mrf.mxu0
        %v1882 = vadd.f32 %v1725, %v1881
        %v1883 = vpop.f32.mrf.mxu0
        %v1884 = vadd.f32 %v1725, %v1883
        %1885 = vmatprep.mubr.f32.mxu0 0.0
        %1886 = vmatmul.mubr.f32.gmra.mxu0 %v1639
        %v1887 = vpop.f32.mrf.mxu0
        %v1888 = vadd.f32 %v1730, %v1887
        %v1889 = vpop.f32.mrf.mxu0
        %v1890 = vadd.f32 %v1730, %v1889
        %1891 = vmatprep.mubr.f32.mxu0 0.0
        %1892 = vmatmul.mubr.f32.gmra.mxu0 %v1640
        %v1893 = vpop.f32.mrf.mxu0
        %v1894 = vadd.f32 %v1735, %v1893
        %v1895 = vpop.f32.mrf.mxu0
        %v1896 = vadd.f32 %v1735, %v1895
        %1897 = vdwg.mxu0
        %1898 = vst [vmem:[%s331 + $0x200] sm:$0xff] %v1804
        %1899 = vst [vmem:[%s331 + $0x208] sm:$0xff] %v1806
        %1900 = vst [vmem:[%s331 + $0x210] sm:$0xff] %v1810
        %1901 = vst [vmem:[%s331 + $0x218] sm:$0xff] %v1812
        %1902 = vst [vmem:[%s331 + $0x220] sm:$0xff] %v1816
        %1903 = vst [vmem:[%s331 + $0x228] sm:$0xff] %v1818
        %1904 = vst [vmem:[%s331 + $0x230] sm:$0xff] %v1822
        %1905 = vst [vmem:[%s331 + $0x238] sm:$0xff] %v1824
        %1906 = vst [vmem:[%s331 + $0x240] sm:$0xff] %v1828
        %1907 = vst [vmem:[%s331 + $0x248] sm:$0xff] %v1830
        %1908 = vst [vmem:[%s331 + $0x250] sm:$0xff] %v1834
        %1909 = vst [vmem:[%s331 + $0x258] sm:$0xff] %v1836
        %1910 = vst [vmem:[%s331 + $0x260] sm:$0xff] %v1840
        %1911 = vst [vmem:[%s331 + $0x268] sm:$0xff] %v1842
        %1912 = vst [vmem:[%s331 + $0x270] sm:$0xff] %v1846
        %1913 = vst [vmem:[%s331 + $0x278] sm:$0xff] %v1848
        %1914 = vst [vmem:[%s331 + $0x280] sm:$0xff] %v1852
        %1915 = vst [vmem:[%s331 + $0x288] sm:$0xff] %v1854
        %1916 = vst [vmem:[%s331 + $0x290] sm:$0xff] %v1858
        %1917 = vst [vmem:[%s331 + $0x298] sm:$0xff] %v1860
        %1918 = vst [vmem:[%s331 + $0x2a0] sm:$0xff] %v1864
        %1919 = vst [vmem:[%s331 + $0x2a8] sm:$0xff] %v1866
        %1920 = vst [vmem:[%s331 + $0x2b0] sm:$0xff] %v1870
        %1921 = vst [vmem:[%s331 + $0x2b8] sm:$0xff] %v1872
        %1922 = vst [vmem:[%s331 + $0x2c0] sm:$0xff] %v1876
        %1923 = vst [vmem:[%s331 + $0x2c8] sm:$0xff] %v1878
        %1924 = vst [vmem:[%s331 + $0x2d0] sm:$0xff] %v1882
        %1925 = vst [vmem:[%s331 + $0x2d8] sm:$0xff] %v1884
        %1926 = vst [vmem:[%s331 + $0x2e0] sm:$0xff] %v1888
        %1927 = vst [vmem:[%s331 + $0x2e8] sm:$0xff] %v1890
        %1928 = vst [vmem:[%s331 + $0x2f0] sm:$0xff] %v1894
        %1929 = vst [vmem:[%s331 + $0x2f8] sm:$0xff] %v1896
        %v1930 = vld [vmem:[#allocation2 + $0x180] sm:$0xff]
        %v1931 = vld [vmem:[#allocation2 + $0x188] sm:$0xff]
        %v1932 = vld [vmem:[#allocation2 + $0x190] sm:$0xff]
        %v1933 = vld [vmem:[#allocation2 + $0x198] sm:$0xff]
        %v1934 = vld [vmem:[#allocation2 + $0x1a0] sm:$0xff]
        %v1935 = vld [vmem:[#allocation2 + $0x1a8] sm:$0xff]
        %v1936 = vld [vmem:[#allocation2 + $0x1b0] sm:$0xff]
        %v1937 = vld [vmem:[#allocation2 + $0x1b8] sm:$0xff]
        %v1938 = vld [vmem:[#allocation2 + $0x1c0] sm:$0xff]
        %v1939 = vld [vmem:[#allocation2 + $0x1c8] sm:$0xff]
        %v1940 = vld [vmem:[#allocation2 + $0x1d0] sm:$0xff]
        %v1941 = vld [vmem:[#allocation2 + $0x1d8] sm:$0xff]
        %v1942 = vld [vmem:[#allocation2 + $0x1e0] sm:$0xff]
        %v1943 = vld [vmem:[#allocation2 + $0x1e8] sm:$0xff]
        %v1944 = vld [vmem:[#allocation2 + $0x1f0] sm:$0xff]
        %v1945 = vld [vmem:[#allocation2 + $0x1f8] sm:$0xff]
        %v1946 = vld [vmem:[%s6 + $0x180] sm:$0xff]
        %v1947 = vld [vmem:[%s6 + $0x188] sm:$0xff]
        %v1948 = vld [vmem:[%s6 + $0x190] sm:$0xff]
        %v1949 = vld [vmem:[%s6 + $0x198] sm:$0xff]
        %v1950 = vld [vmem:[%s6 + $0x1a0] sm:$0xff]
        %v1951 = vld [vmem:[%s6 + $0x1a8] sm:$0xff]
        %v1952 = vld [vmem:[%s6 + $0x1b0] sm:$0xff]
        %v1953 = vld [vmem:[%s6 + $0x1b8] sm:$0xff]
        %v1954 = vld [vmem:[%s6 + $0x1c0] sm:$0xff]
        %v1955 = vld [vmem:[%s6 + $0x1c8] sm:$0xff]
        %v1956 = vld [vmem:[%s6 + $0x1d0] sm:$0xff]
        %v1957 = vld [vmem:[%s6 + $0x1d8] sm:$0xff]
        %v1958 = vld [vmem:[%s6 + $0x1e0] sm:$0xff]
        %v1959 = vld [vmem:[%s6 + $0x1e8] sm:$0xff]
        %v1960 = vld [vmem:[%s6 + $0x1f0] sm:$0xff]
        %v1961 = vld [vmem:[%s6 + $0x1f8] sm:$0xff]
        %1963 = vset.pattern.permute.xlu0 0
        %1964 = vperm.xlu0 %1963, %v1946
        %v1965 = vpop.permute.xlu0 %1964
        %1968 = vset.pattern.permute.xlu0 0
        %1969 = vperm.xlu0 %1968, %v1947
        %v1970 = vpop.permute.xlu0 %1969
        %1973 = vset.pattern.permute.xlu0 0
        %1974 = vperm.xlu0 %1973, %v1948
        %v1975 = vpop.permute.xlu0 %1974
        %1978 = vset.pattern.permute.xlu0 0
        %1979 = vperm.xlu0 %1978, %v1949
        %v1980 = vpop.permute.xlu0 %1979
        %1983 = vset.pattern.permute.xlu0 0
        %1984 = vperm.xlu0 %1983, %v1950
        %v1985 = vpop.permute.xlu0 %1984
        %1988 = vset.pattern.permute.xlu0 0
        %1989 = vperm.xlu0 %1988, %v1951
        %v1990 = vpop.permute.xlu0 %1989
        %1993 = vset.pattern.permute.xlu0 0
        %1994 = vperm.xlu0 %1993, %v1952
        %v1995 = vpop.permute.xlu0 %1994
        %1998 = vset.pattern.permute.xlu0 0
        %1999 = vperm.xlu0 %1998, %v1953
        %v2000 = vpop.permute.xlu0 %1999
        %2003 = vset.pattern.permute.xlu0 0
        %2004 = vperm.xlu0 %2003, %v1954
        %v2005 = vpop.permute.xlu0 %2004
        %2008 = vset.pattern.permute.xlu0 0
        %2009 = vperm.xlu0 %2008, %v1955
        %v2010 = vpop.permute.xlu0 %2009
        %2013 = vset.pattern.permute.xlu0 0
        %2014 = vperm.xlu0 %2013, %v1956
        %v2015 = vpop.permute.xlu0 %2014
        %2018 = vset.pattern.permute.xlu0 0
        %2019 = vperm.xlu0 %2018, %v1957
        %v2020 = vpop.permute.xlu0 %2019
        %2023 = vset.pattern.permute.xlu0 0
        %2024 = vperm.xlu0 %2023, %v1958
        %v2025 = vpop.permute.xlu0 %2024
        %2028 = vset.pattern.permute.xlu0 0
        %2029 = vperm.xlu0 %2028, %v1959
        %v2030 = vpop.permute.xlu0 %2029
        %2033 = vset.pattern.permute.xlu0 0
        %2034 = vperm.xlu0 %2033, %v1960
        %v2035 = vpop.permute.xlu0 %2034
        %2038 = vset.pattern.permute.xlu0 0
        %2039 = vperm.xlu0 %2038, %v1961
        %v2040 = vpop.permute.xlu0 %2039
        %2042 = vmatprep.subr.mxu0 %v1014
        %2043 = vmatpush1.msra.mxu0 %v1013
        %2044 = vmatprep.subr.mxu0 %v1012
        %2045 = vmatpush1.msra.mxu0 %v1011
        %2046 = vmatprep.subr.mxu0 %v1010
        %2047 = vmatpush1.msra.mxu0 %v1009
        %2048 = vmatprep.subr.mxu0 %v1008
        %2049 = vmatpush1.msra.mxu0 %v1007
        %2050 = vmatprep.subr.mxu0 %v1006
        %2051 = vmatpush1.msra.mxu0 %v1005
        %2052 = vmatprep.subr.mxu0 %v1004
        %2053 = vmatpush1.msra.mxu0 %v1003
        %2054 = vmatprep.subr.mxu0 %v1002
        %2055 = vmatpush1.msra.mxu0 %v1001
        %2056 = vmatprep.subr.mxu0 %v1000
        %2057 = vmatpush1.msra.mxu0 %v999
        %2058 = vmatprep.subr.mxu0 %v998
        %2059 = vmatpush1.msra.mxu0 %v997
        %2060 = vmatprep.subr.mxu0 %v996
        %2061 = vmatpush1.msra.mxu0 %v995
        %2062 = vmatprep.subr.mxu0 %v994
        %2063 = vmatpush1.msra.mxu0 %v993
        %2064 = vmatprep.subr.mxu0 %v992
        %2065 = vmatpush1.msra.mxu0 %v991
        %2066 = vmatprep.subr.mxu0 %v990
        %2067 = vmatpush1.msra.mxu0 %v989
        %2068 = vmatprep.subr.mxu0 %v988
        %2069 = vmatpush1.msra.mxu0 %v987
        %2070 = vmatprep.subr.mxu0 %v986
        %2071 = vmatpush1.msra.mxu0 %v985
        %2072 = vmatprep.subr.mxu0 %v984
        %2073 = vmatpush1.msra.mxu0 %v983
        %2074 = vmatprep.subr.mxu0 0.0
        %2075 = vmatpush2.msra.mxu0 0.0
        %2076 = vmatprep.subr.mxu0 0.0
        %2077 = vmatpush2.msra.mxu0 0.0
        %2078 = vmatprep.subr.mxu0 0.0
        %2079 = vmatpush2.msra.mxu0 0.0
        %2080 = vmatprep.subr.mxu0 0.0
        %2081 = vmatpush2.msra.mxu0 0.0
        %2082 = vmatprep.subr.mxu0 0.0
        %2083 = vmatpush2.msra.mxu0 0.0
        %2084 = vmatprep.subr.mxu0 0.0
        %2085 = vmatpush2.msra.mxu0 0.0
        %2086 = vmatprep.subr.mxu0 0.0
        %2087 = vmatpush2.msra.mxu0 0.0
        %2088 = vmatprep.subr.mxu0 0.0
        %2089 = vmatpush2.msra.mxu0 0.0
        %2090 = vmatprep.subr.mxu0 0.0
        %2091 = vmatpush2.msra.mxu0 0.0
        %2092 = vmatprep.subr.mxu0 0.0
        %2093 = vmatpush2.msra.mxu0 0.0
        %2094 = vmatprep.subr.mxu0 0.0
        %2095 = vmatpush2.msra.mxu0 0.0
        %2096 = vmatprep.subr.mxu0 0.0
        %2097 = vmatpush2.msra.mxu0 0.0
        %2098 = vmatprep.subr.mxu0 0.0
        %2099 = vmatpush2.msra.mxu0 0.0
        %2100 = vmatprep.subr.mxu0 0.0
        %2101 = vmatpush2.msra.mxu0 0.0
        %2102 = vmatprep.subr.mxu0 0.0
        %2103 = vmatpush2.msra.mxu0 0.0
        %2104 = vmatprep.subr.mxu0 0.0
        %2105 = vmatpush2.msra.mxu0 0.0
        %2106 = vmatprep.mubr.f32.mxu0 0.0
        %2107 = vmatmul.mubr.f32.gmra.mxu0 %v1930
        %v2108 = vpop.f32.mrf.mxu0
        %v2109 = vadd.f32 %v1965, %v2108
        %v2110 = vpop.f32.mrf.mxu0
        %v2111 = vadd.f32 %v1965, %v2110
        %2112 = vmatprep.mubr.f32.mxu0 0.0
        %2113 = vmatmul.mubr.f32.gmra.mxu0 %v1931
        %v2114 = vpop.f32.mrf.mxu0
        %v2115 = vadd.f32 %v1970, %v2114
        %v2116 = vpop.f32.mrf.mxu0
        %v2117 = vadd.f32 %v1970, %v2116
        %2118 = vmatprep.mubr.f32.mxu0 0.0
        %2119 = vmatmul.mubr.f32.gmra.mxu0 %v1932
        %v2120 = vpop.f32.mrf.mxu0
        %v2121 = vadd.f32 %v1975, %v2120
        %v2122 = vpop.f32.mrf.mxu0
        %v2123 = vadd.f32 %v1975, %v2122
        %2124 = vmatprep.mubr.f32.mxu0 0.0
        %2125 = vmatmul.mubr.f32.gmra.mxu0 %v1933
        %v2126 = vpop.f32.mrf.mxu0
        %v2127 = vadd.f32 %v1980, %v2126
        %v2128 = vpop.f32.mrf.mxu0
        %v2129 = vadd.f32 %v1980, %v2128
        %2130 = vmatprep.mubr.f32.mxu0 0.0
        %2131 = vmatmul.mubr.f32.gmra.mxu0 %v1934
        %v2132 = vpop.f32.mrf.mxu0
        %v2133 = vadd.f32 %v1985, %v2132
        %v2134 = vpop.f32.mrf.mxu0
        %v2135 = vadd.f32 %v1985, %v2134
        %2136 = vmatprep.mubr.f32.mxu0 0.0
        %2137 = vmatmul.mubr.f32.gmra.mxu0 %v1935
        %v2138 = vpop.f32.mrf.mxu0
        %v2139 = vadd.f32 %v1990, %v2138
        %v2140 = vpop.f32.mrf.mxu0
        %v2141 = vadd.f32 %v1990, %v2140
        %2142 = vmatprep.mubr.f32.mxu0 0.0
        %2143 = vmatmul.mubr.f32.gmra.mxu0 %v1936
        %v2144 = vpop.f32.mrf.mxu0
        %v2145 = vadd.f32 %v1995, %v2144
        %v2146 = vpop.f32.mrf.mxu0
        %v2147 = vadd.f32 %v1995, %v2146
        %2148 = vmatprep.mubr.f32.mxu0 0.0
        %2149 = vmatmul.mubr.f32.gmra.mxu0 %v1937
        %v2150 = vpop.f32.mrf.mxu0
        %v2151 = vadd.f32 %v2000, %v2150
        %v2152 = vpop.f32.mrf.mxu0
        %v2153 = vadd.f32 %v2000, %v2152
        %2154 = vmatprep.mubr.f32.mxu0 0.0
        %2155 = vmatmul.mubr.f32.gmra.mxu0 %v1938
        %v2156 = vpop.f32.mrf.mxu0
        %v2157 = vadd.f32 %v2005, %v2156
        %v2158 = vpop.f32.mrf.mxu0
        %v2159 = vadd.f32 %v2005, %v2158
        %2160 = vmatprep.mubr.f32.mxu0 0.0
        %2161 = vmatmul.mubr.f32.gmra.mxu0 %v1939
        %v2162 = vpop.f32.mrf.mxu0
        %v2163 = vadd.f32 %v2010, %v2162
        %v2164 = vpop.f32.mrf.mxu0
        %v2165 = vadd.f32 %v2010, %v2164
        %2166 = vmatprep.mubr.f32.mxu0 0.0
        %2167 = vmatmul.mubr.f32.gmra.mxu0 %v1940
        %v2168 = vpop.f32.mrf.mxu0
        %v2169 = vadd.f32 %v2015, %v2168
        %v2170 = vpop.f32.mrf.mxu0
        %v2171 = vadd.f32 %v2015, %v2170
        %2172 = vmatprep.mubr.f32.mxu0 0.0
        %2173 = vmatmul.mubr.f32.gmra.mxu0 %v1941
        %v2174 = vpop.f32.mrf.mxu0
        %v2175 = vadd.f32 %v2020, %v2174
        %v2176 = vpop.f32.mrf.mxu0
        %v2177 = vadd.f32 %v2020, %v2176
        %2178 = vmatprep.mubr.f32.mxu0 0.0
        %2179 = vmatmul.mubr.f32.gmra.mxu0 %v1942
        %v2180 = vpop.f32.mrf.mxu0
        %v2181 = vadd.f32 %v2025, %v2180
        %v2182 = vpop.f32.mrf.mxu0
        %v2183 = vadd.f32 %v2025, %v2182
        %2184 = vmatprep.mubr.f32.mxu0 0.0
        %2185 = vmatmul.mubr.f32.gmra.mxu0 %v1943
        %v2186 = vpop.f32.mrf.mxu0
        %v2187 = vadd.f32 %v2030, %v2186
        %v2188 = vpop.f32.mrf.mxu0
        %v2189 = vadd.f32 %v2030, %v2188
        %2190 = vmatprep.mubr.f32.mxu0 0.0
        %2191 = vmatmul.mubr.f32.gmra.mxu0 %v1944
        %v2192 = vpop.f32.mrf.mxu0
        %v2193 = vadd.f32 %v2035, %v2192
        %v2194 = vpop.f32.mrf.mxu0
        %v2195 = vadd.f32 %v2035, %v2194
        %2196 = vmatprep.mubr.f32.mxu0 0.0
        %2197 = vmatmul.mubr.f32.gmra.mxu0 %v1945
        %v2198 = vpop.f32.mrf.mxu0
        %v2199 = vadd.f32 %v2040, %v2198
        %v2200 = vpop.f32.mrf.mxu0
        %v2201 = vadd.f32 %v2040, %v2200
        %2202 = vdwg.mxu0
        %2203 = vst [vmem:[%s331 + $0x300] sm:$0xff] %v2109
        %2204 = vst [vmem:[%s331 + $0x308] sm:$0xff] %v2111
        %2205 = vst [vmem:[%s331 + $0x310] sm:$0xff] %v2115
        %2206 = vst [vmem:[%s331 + $0x318] sm:$0xff] %v2117
        %2207 = vst [vmem:[%s331 + $0x320] sm:$0xff] %v2121
        %2208 = vst [vmem:[%s331 + $0x328] sm:$0xff] %v2123
        %2209 = vst [vmem:[%s331 + $0x330] sm:$0xff] %v2127
        %2210 = vst [vmem:[%s331 + $0x338] sm:$0xff] %v2129
        %2211 = vst [vmem:[%s331 + $0x340] sm:$0xff] %v2133
        %2212 = vst [vmem:[%s331 + $0x348] sm:$0xff] %v2135
        %2213 = vst [vmem:[%s331 + $0x350] sm:$0xff] %v2139
        %2214 = vst [vmem:[%s331 + $0x358] sm:$0xff] %v2141
        %2215 = vst [vmem:[%s331 + $0x360] sm:$0xff] %v2145
        %2216 = vst [vmem:[%s331 + $0x368] sm:$0xff] %v2147
        %2217 = vst [vmem:[%s331 + $0x370] sm:$0xff] %v2151
        %2218 = vst [vmem:[%s331 + $0x378] sm:$0xff] %v2153
        %2219 = vst [vmem:[%s331 + $0x380] sm:$0xff] %v2157
        %2220 = vst [vmem:[%s331 + $0x388] sm:$0xff] %v2159
        %2221 = vst [vmem:[%s331 + $0x390] sm:$0xff] %v2163
        %2222 = vst [vmem:[%s331 + $0x398] sm:$0xff] %v2165
        %2223 = vst [vmem:[%s331 + $0x3a0] sm:$0xff] %v2169
        %2224 = vst [vmem:[%s331 + $0x3a8] sm:$0xff] %v2171
        %2225 = vst [vmem:[%s331 + $0x3b0] sm:$0xff] %v2175
        %2226 = vst [vmem:[%s331 + $0x3b8] sm:$0xff] %v2177
        %2227 = vst [vmem:[%s331 + $0x3c0] sm:$0xff] %v2181
        %2228 = vst [vmem:[%s331 + $0x3c8] sm:$0xff] %v2183
        %2229 = vst [vmem:[%s331 + $0x3d0] sm:$0xff] %v2187
        %2230 = vst [vmem:[%s331 + $0x3d8] sm:$0xff] %v2189
        %2231 = vst [vmem:[%s331 + $0x3e0] sm:$0xff] %v2193
        %2232 = vst [vmem:[%s331 + $0x3e8] sm:$0xff] %v2195
        %2233 = vst [vmem:[%s331 + $0x3f0] sm:$0xff] %v2199
        %2234 = vst [vmem:[%s331 + $0x3f8] sm:$0xff] %v2201
        %s2235 = smul.u32 2, %s24
        %p2236 = scmp.lt.s32.totalorder %s23, 3
        %s2237 = scalar_select %p2236, %s23, 3
        %p2238 = scmp.lt.s32.totalorder %s2235, 1
        %s2239 = scalar_select %p2238, %s2235, 1
        %s2240 = smul.addr %s2237, 128
        %s2241 = sadd.s32 %s2239, %s2240
        %s2242 = smul.addr %s2241, 8
        %s2243 = scalar_lea.vmem %s7, %s2242
        // Predicated region
        $region53: #{initial_h_forward.1} parent=47 // pred_check
          %p2244 = pneg %p205
        $region54: #{initial_h_forward.1} parent=47 // pred_check_branch
          %2246 = sbr.rel (%p2244) target = $region56
        $region55: #{initial_h_forward.1} parent=47 // pred_region
          %s2247 = smul.u32 2, %s24
        $region56: #{initial_h_forward.1} parent=47 // pred_fallthru
          _
      $region48: #{initial_h_forward.1} parent=5 // pred_fallthru
        _
      %p2248 = scmp.le.s32.totalorder 2, %s14
      // Predicated region
      $region57: #{initial_h_forward.1} parent=5 // pred_check
        %p2249 = pneg %p2248
      $region58: #{initial_h_forward.1} parent=5 // pred_check_branch
        %2251 = sbr.rel (%p2249) target = $region60
      $region59: #{initial_h_forward.1} parent=5 // pred_region
        %s2252 = ssub.s32 %s14, 2
        // Predicated region
        $region61: #{initial_h_forward.1} parent=59 // pred_check
          %p2253 = pneg %p211
        $region62: #{initial_h_forward.1} parent=59 // pred_check_branch
          %2255 = sbr.rel (%p2253) target = $region64
        $region63: #{initial_h_forward.1} parent=59 // pred_region
          %s2256 = smul.u32 2, %s26
          %p2257 = scmp.lt.s32.totalorder %s25, 3
          %s2258 = scalar_select %p2257, %s25, 3
          %p2259 = scmp.lt.s32.totalorder %s2256, 1
          %s2260 = scalar_select %p2259, %s2256, 1
          %s2261 = smul.addr %s2258, 128
          %s2262 = sadd.s32 %s2260, %s2261
          %s2263 = smul.addr %s2262, 8
          %s2264 = scalar_lea.vmem %s7, %s2263
        $region64: #{initial_h_forward.1} parent=59 // pred_fallthru
          _
      $region60: #{initial_h_forward.1} parent=5 // pred_fallthru
        _
    $region6: #{initial_h_forward.1} parent=1 // loop_footer
      %s18 = sadd.s32 1, %s14
    $region7: #{initial_h_forward.1} parent=1 // loop_footer_branch
      %13 = sbr.rel target = $region3
    $region8: #{initial_h_forward.1} parent=1 // loop_exit
      _
    %2265 = vsyncpa [#allocation3], 1
    %s2266 = scalar_lea.sflag [#allocation3], 1
    %2267 = vsyncpa %s2266, 1

</llo_original>
